<compile_context>
chip_gen: v7x
topology: tpu7x:2x2x1
jax: 0.10.0
libtpu: 0.0.40
codegen_flags: <defaults>
</compile_context>

<pallas_src>
import math

import jax
import jax.numpy as jnp
import numpy as np
from jax.experimental import pallas as pl
from jax.experimental.pallas import tpu as pltpu


# ----------------------------------------------------------------------------
# Pallas kernel: one B-tile (lane axis), features on sublanes.
# ----------------------------------------------------------------------------
def obs_encode_kernel(s_ref, o_ref,
                      kw1_ref, kb1_ref, kw2_ref, kb2_ref,
                      qvw1_ref, qvb1_ref, qw2_ref, qb2_ref,
                      vw2_ref, vb2_ref,
                      out_ref, rel_ref):
    f32 = jnp.float32
    s = s_ref[...]                                                  # (22, Bt)

    # key_self MLP (attention scale already folded into kw2 / kb2)
    hk = jnp.maximum(
        jnp.dot(kw1_ref[...], s, preferred_element_type=f32) + kb1_ref[...], 0.0)
    k = jnp.dot(kw2_ref[...], hk, preferred_element_type=f32) + kb2_ref[...]      # (32, Bt)

    n_other = o_ref.shape[0]
    qh = qw2_ref.shape[1]                                           # 16 (query hidden)

    scores = []
    values = []
    for n in range(n_other):                                        # N small & static
        o_n = o_ref[n]                                              # (22, Bt)
        # fused query/value first layer: (48, 22) @ (22, Bt)
        h = jnp.maximum(
            jnp.dot(qvw1_ref[...], o_n, preferred_element_type=f32) + qvb1_ref[...],
            0.0)                                                    # (48, Bt)
        q_n = jnp.dot(qw2_ref[...], h[:qh, :],
                      preferred_element_type=f32) + qb2_ref[...]    # (32, Bt)
        v_n = jnp.dot(vw2_ref[...], h[qh:, :],
                      preferred_element_type=f32) + vb2_ref[...]    # (64, Bt)
        # score_n[b] = sum_d k[d, b] * q_n[d, b]  (VPU mult + sublane reduce)
        scores.append(jnp.sum(k * q_n, axis=0, keepdims=True))      # (1, Bt)
        values.append(v_n)

    # softmax over the N "others", lane-dense in B
    m = scores[0]
    for n in range(1, n_other):
        m = jnp.maximum(m, scores[n])
    exps = [jnp.exp(sc - m) for sc in scores]
    denom = exps[0]
    for n in range(1, n_other):
        denom = denom + exps[n]
    inv = pl.reciprocal(denom, approx=False)
    probs = [e * inv for e in exps]                                 # each (1, Bt)

    # weighted sum of values: (1, Bt) broadcast over 64 sublanes
    acc = probs[0] * values[0]
    for n in range(1, n_other):
        acc = acc + probs[n] * values[n]
    out_ref[...] = acc                                              # (64, Bt)

    for n in range(n_other):
        rel_ref[pl.ds(n, 1), :] = probs[n]                          # (N, Bt)


# ----------------------------------------------------------------------------
# Parameter initialization (xavier_normal weights, zero biases)
# Weights stored canonically as (in, out); biases as (1, out).
# ----------------------------------------------------------------------------
def xavier_normal(key, fan_in, fan_out):
    std = math.sqrt(2.0 / (fan_in + fan_out))
    return std * jax.random.normal(key, (fan_in, fan_out), dtype=jnp.float32)


def init_params(key):
    ks = jax.random.split(key, 6)
    return {
        # key_self: Linear(22,16) -> ReLU -> Linear(16,32)
        "kw1": xavier_normal(ks[0], 22, 16), "kb1": jnp.zeros((1, 16), jnp.float32),
        "kw2": xavier_normal(ks[1], 16, 32), "kb2": jnp.zeros((1, 32), jnp.float32),
        # query_others: Linear(22,16) -> ReLU -> Linear(16,32)
        "qw1": xavier_normal(ks[2], 22, 16), "qb1": jnp.zeros((1, 16), jnp.float32),
        "qw2": xavier_normal(ks[3], 16, 32), "qb2": jnp.zeros((1, 32), jnp.float32),
        # value_others: Linear(22,32) -> ReLU -> Linear(32,64)
        "vw1": xavier_normal(ks[4], 22, 32), "vb1": jnp.zeros((1, 32), jnp.float32),
        "vw2": xavier_normal(ks[5], 32, 64), "vb2": jnp.zeros((1, 64), jnp.float32),
    }


def _round_up(x, m):
    return (x + m - 1) // m * m


# ----------------------------------------------------------------------------
# Wrapper: devide_obs glue, transposed/fused params, pallas_call, reshape.
# ----------------------------------------------------------------------------
def obs_encode_forward(obs, task, params, *, block_b=512):
    bs, n_a, obs_dim = obs.shape
    others_num = int(task[0]) - 1
    landmark_num = int(task[1][-1])
    self_dim, per_other_dim, per_lm_dim = 4, 22, 3
    self_feat = self_dim + per_lm_dim * landmark_num          # must be 22

    B = bs * n_a
    block_b = _round_up(block_b, 128)
    bt = min(block_b, _round_up(B, 128))                      # lane tile (mult of 128)
    B_pad = _round_up(B, bt)
    grid_b = B_pad // bt

    x = obs.reshape(B, obs_dim).astype(jnp.float32)
    if B_pad != B:
        x = jnp.pad(x, ((0, B_pad - B), (0, 0)))

    # devide_obs (glue) + transpose to lane-dense-B layout
    lm_start = self_dim + per_other_dim * others_num
    obs_self = jnp.concatenate(
        [x[:, :self_dim], x[:, lm_start:lm_start + per_lm_dim * landmark_num]],
        axis=-1)                                              # (B_pad, 22)
    obs_self_t = obs_self.T                                   # (22, B_pad)
    obs_others_t = (x[:, self_dim:self_dim + per_other_dim * others_num]
                    .reshape(B_pad, others_num, per_other_dim)
                    .transpose(1, 2, 0))                      # (N, 22, B_pad)

    # transposed weights; fold attention scale into key head; fuse q/v layer 1
    scale = 1.0 / math.sqrt(2.0 * 32.0)
    kw1_t, kb1_t = params["kw1"].T, params["kb1"].T                       # (16,22),(16,1)
    kw2_t, kb2_t = (params["kw2"] * scale).T, (params["kb2"] * scale).T   # (32,16),(32,1)
    qvw1_t = jnp.concatenate([params["qw1"].T, params["vw1"].T], axis=0)  # (48,22)
    qvb1_t = jnp.concatenate([params["qb1"].T, params["vb1"].T], axis=0)  # (48,1)
    qw2_t, qb2_t = params["qw2"].T, params["qb2"].T                       # (32,16),(32,1)
    vw2_t, vb2_t = params["vw2"].T, params["vb2"].T                       # (64,32),(64,1)

    weights = [kw1_t, kb1_t, kw2_t, kb2_t,
               qvw1_t, qvb1_t, qw2_t, qb2_t, vw2_t, vb2_t]
    inputs = [obs_self_t, obs_others_t] + weights

    def const_spec(a):
        nd = a.ndim
        return pl.BlockSpec(a.shape, lambda i, _nd=nd: (0,) * _nd)

    in_specs = (
        [pl.BlockSpec((self_feat, bt), lambda i: (0, i)),
         pl.BlockSpec((others_num, per_other_dim, bt), lambda i: (0, 0, i))]
        + [const_spec(w) for w in weights])

    out_t, rel_t = pl.pallas_call(
        obs_encode_kernel,
        out_shape=(
            jax.ShapeDtypeStruct((64, B_pad), jnp.float32),
            jax.ShapeDtypeStruct((others_num, B_pad), jnp.float32),
        ),
        grid_spec=pltpu.PrefetchScalarGridSpec(
            num_scalar_prefetch=0,
            grid=(grid_b,),
            in_specs=in_specs,
            out_specs=[
                pl.BlockSpec((64, bt), lambda i: (0, i)),
                pl.BlockSpec((others_num, bt), lambda i: (0, i)),
            ],
        ),
        compiler_params=pltpu.CompilerParams(
            dimension_semantics=("parallel",),
            vmem_limit_bytes=32 * 1024 * 1024),
    )(*inputs)

    out_t = out_t[:, :B]                                      # (64, B)
    rel_t = rel_t[:, :B]                                      # (N, B)

    # others.matmul(v).squeeze().view(bs, n_a, -1).permute(0, 2, 1)
    others_out = out_t.reshape(64, bs, n_a).transpose(1, 0, 2)    # (bs, 64, n_a)
    relation = rel_t.T.reshape(bs, n_a, others_num)               # (bs, n_a, N)
    return others_out, relation


# ----------------------------------------------------------------------------
# Pure-JAX reference (mirrors the PyTorch forward) for a correctness check
# ----------------------------------------------------------------------------
def obs_encode_reference(obs, task, params):
    bs, n_a, obs_dim = obs.shape
    others_num = task[0] - 1
    landmark_num = task[1][-1]
    x = obs.reshape(bs * n_a, obs_dim)
    obs_self = x[:, :4]
    obs_others = x[:, 4:4 + 22 * others_num].reshape(-1, others_num, 22)
    lm_start = 4 + 22 * others_num
    obs_landmark = x[:, lm_start:lm_start + 3 * landmark_num]
    obs_self = jnp.concatenate([obs_self, obs_landmark], -1)[:, None, :]

    def mlp(x, w1, b1, w2, b2):
        return jnp.maximum(x @ w1 + b1, 0.0) @ w2 + b2

    k = mlp(obs_self, params["kw1"], params["kb1"], params["kw2"], params["kb2"])
    q = mlp(obs_others, params["qw1"], params["qb1"], params["qw2"], params["qb2"])
    v = mlp(obs_others, params["vw1"], params["vb1"], params["vw2"], params["vb2"])
    scores = (1.0 / math.sqrt(2.0 * 32.0)) * jnp.einsum('bqd,bnd->bqn', k, q)
    p = jax.nn.softmax(scores, axis=-1)
    out = jnp.einsum('bqn,bnd->bqd', p, v)
    return (out.reshape(bs * n_a, 64).reshape(bs, n_a, 64).transpose(0, 2, 1),
            p.reshape(bs, n_a, others_num))


# ----------------------------------------------------------------------------
if __name__ == "__main__":
    key = jax.random.PRNGKey(0)
    k_obs, k_par, k_obs2 = jax.random.split(key, 3)
    params = init_params(k_par)

    # config 1: small shapes (bs=2, n_a=4, landmark_num=6 so key_self sees 22)
    bs, n_a = 2, 4
    task = (n_a, [6])
    others_num = task[0] - 1                      # 3
    obs_dim = 4 + 22 * others_num + 3 * task[1][-1]   # 88
    obs = jax.random.normal(k_obs, (bs, n_a, obs_dim), dtype=jnp.float32)

    out, relation = obs_encode_forward(obs, task, params)
    out = jax.block_until_ready(out)
    relation = jax.block_until_ready(relation)
    ref_out, ref_rel = obs_encode_reference(obs, task, params)
    assert out.shape == (bs, 64, n_a), out.shape
    assert relation.shape == (bs, n_a, others_num), relation.shape
    np.testing.assert_allclose(np.asarray(out), np.asarray(ref_out),
                               rtol=2e-4, atol=2e-4)
    np.testing.assert_allclose(np.asarray(relation), np.asarray(ref_rel),
                               rtol=2e-4, atol=2e-4)

    # config 2: exercises a multi-step parallel grid over B (B=288, tile=128)
    bs2, n_a2 = 48, 6
    task2 = (n_a2, [6])
    others_num2 = task2[0] - 1                    # 5
    obs_dim2 = 4 + 22 * others_num2 + 18          # 132
    obs2 = jax.random.normal(k_obs2, (bs2, n_a2, obs_dim2), dtype=jnp.float32)

    out2, rel2 = obs_encode_forward(obs2, task2, params, block_b=128)
    out2 = jax.block_until_ready(out2)
    rel2 = jax.block_until_ready(rel2)
    ref_out2, ref_rel2 = obs_encode_reference(obs2, task2, params)
    assert out2.shape == (bs2, 64, n_a2), out2.shape
    assert rel2.shape == (bs2, n_a2, others_num2), rel2.shape
    np.testing.assert_allclose(np.asarray(out2), np.asarray(ref_out2),
                               rtol=2e-4, atol=2e-4)
    np.testing.assert_allclose(np.asarray(rel2), np.asarray(ref_rel2),
                               rtol=2e-4, atol=2e-4)

    print("KERNEL_OK")
</pallas_src>

<mosaic_0001>
module attributes {stable_mosaic.version = 11 : i64} {
  func.func @obs_encode_kernel(%arg0: i32, %arg1: memref<22x128xf32, #tpu.memory_space<vmem>>, %arg2: memref<3x22x128xf32, #tpu.memory_space<vmem>>, %arg3: memref<16x22xf32, #tpu.memory_space<vmem>>, %arg4: memref<16x1xf32, #tpu.memory_space<vmem>>, %arg5: memref<32x16xf32, #tpu.memory_space<vmem>>, %arg6: memref<32x1xf32, #tpu.memory_space<vmem>>, %arg7: memref<48x22xf32, #tpu.memory_space<vmem>>, %arg8: memref<48x1xf32, #tpu.memory_space<vmem>>, %arg9: memref<32x16xf32, #tpu.memory_space<vmem>>, %arg10: memref<32x1xf32, #tpu.memory_space<vmem>>, %arg11: memref<64x32xf32, #tpu.memory_space<vmem>>, %arg12: memref<64x1xf32, #tpu.memory_space<vmem>>, %arg13: memref<64x128xf32, #tpu.memory_space<vmem>>, %arg14: memref<3x128xf32, #tpu.memory_space<vmem>>) attributes {dimension_semantics = [#tpu.dimension_semantics<parallel>], iteration_bounds = array<i64: 1>, scalar_prefetch = 0 : i64, scratch_operands = 0 : i64, tpu.core_type = #tpu.core_type<tc>, window_params = [{transform_indices = @transform_0, window_bounds = array<i64: 22, 128>}, {transform_indices = @transform_1, window_bounds = array<i64: 3, 22, 128>}, {pipeline_mode = #tpu.pipeline_mode<synchronous>, transform_indices = @transform_2, window_bounds = array<i64: 16, 22>}, {pipeline_mode = #tpu.pipeline_mode<synchronous>, transform_indices = @transform_3, window_bounds = array<i64: 16, 1>}, {pipeline_mode = #tpu.pipeline_mode<synchronous>, transform_indices = @transform_4, window_bounds = array<i64: 32, 16>}, {pipeline_mode = #tpu.pipeline_mode<synchronous>, transform_indices = @transform_5, window_bounds = array<i64: 32, 1>}, {pipeline_mode = #tpu.pipeline_mode<synchronous>, transform_indices = @transform_6, window_bounds = array<i64: 48, 22>}, {pipeline_mode = #tpu.pipeline_mode<synchronous>, transform_indices = @transform_7, window_bounds = array<i64: 48, 1>}, {pipeline_mode = #tpu.pipeline_mode<synchronous>, transform_indices = @transform_8, window_bounds = array<i64: 32, 16>}, {pipeline_mode = #tpu.pipeline_mode<synchronous>, transform_indices = @transform_9, window_bounds = array<i64: 32, 1>}, {pipeline_mode = #tpu.pipeline_mode<synchronous>, transform_indices = @transform_10, window_bounds = array<i64: 64, 32>}, {pipeline_mode = #tpu.pipeline_mode<synchronous>, transform_indices = @transform_11, window_bounds = array<i64: 64, 1>}, {transform_indices = @transform_12, window_bounds = array<i64: 64, 128>}, {transform_indices = @transform_13, window_bounds = array<i64: 3, 128>}]} {
    %c0 = arith.constant 0 : index
    %c0_0 = arith.constant 0 : index
    %0 = vector.load %arg1[%c0, %c0_0] : memref<22x128xf32, #tpu.memory_space<vmem>>, vector<22x128xf32>
    %c0_1 = arith.constant 0 : index
    %c0_2 = arith.constant 0 : index
    %1 = vector.load %arg3[%c0_1, %c0_2] : memref<16x22xf32, #tpu.memory_space<vmem>>, vector<16x22xf32>
    %cst = arith.constant dense<0.000000e+00> : vector<16x128xf32>
    %2 = tpu.matmul %1, %0, %cst {dimension_numbers = #tpu.dot_dimension_numbers<[1], [0], [0], [1], [0, 0, 1, 1], [], []>} : vector<16x22xf32>, vector<22x128xf32>, vector<16x128xf32> -> vector<16x128xf32>
    %c0_3 = arith.constant 0 : index
    %c0_4 = arith.constant 0 : index
    %3 = vector.load %arg4[%c0_3, %c0_4] : memref<16x1xf32, #tpu.memory_space<vmem>>, vector<16x1xf32>
    %4 = vector.broadcast %3 : vector<16x1xf32> to vector<16x128xf32>
    %5 = arith.addf %2, %4 : vector<16x128xf32>
    %cst_5 = arith.constant 0.000000e+00 : f32
    %6 = vector.broadcast %cst_5 : f32 to vector<16x128xf32>
    %7 = arith.maximumf %5, %6 : vector<16x128xf32>
    %c0_6 = arith.constant 0 : index
    %c0_7 = arith.constant 0 : index
    %8 = vector.load %arg5[%c0_6, %c0_7] : memref<32x16xf32, #tpu.memory_space<vmem>>, vector<32x16xf32>
    %cst_8 = arith.constant dense<0.000000e+00> : vector<32x128xf32>
    %9 = tpu.matmul %8, %7, %cst_8 {dimension_numbers = #tpu.dot_dimension_numbers<[1], [0], [0], [1], [0, 0, 1, 1], [], []>} : vector<32x16xf32>, vector<16x128xf32>, vector<32x128xf32> -> vector<32x128xf32>
    %c0_9 = arith.constant 0 : index
    %c0_10 = arith.constant 0 : index
    %10 = vector.load %arg6[%c0_9, %c0_10] : memref<32x1xf32, #tpu.memory_space<vmem>>, vector<32x1xf32>
    %11 = vector.broadcast %10 : vector<32x1xf32> to vector<32x128xf32>
    %12 = arith.addf %9, %11 : vector<32x128xf32>
    %c0_11 = arith.constant 0 : index
    %c0_12 = arith.constant 0 : index
    %c0_13 = arith.constant 0 : index
    %13 = vector.load %arg2[%c0_11, %c0_12, %c0_13] : memref<3x22x128xf32, #tpu.memory_space<vmem>>, vector<1x22x128xf32>
    %14 = vector.shape_cast %13 : vector<1x22x128xf32> to vector<22x128xf32>
    %c0_14 = arith.constant 0 : index
    %c0_15 = arith.constant 0 : index
    %15 = vector.load %arg7[%c0_14, %c0_15] : memref<48x22xf32, #tpu.memory_space<vmem>>, vector<48x22xf32>
    %cst_16 = arith.constant dense<0.000000e+00> : vector<48x128xf32>
    %16 = tpu.matmul %15, %14, %cst_16 {dimension_numbers = #tpu.dot_dimension_numbers<[1], [0], [0], [1], [0, 0, 1, 1], [], []>} : vector<48x22xf32>, vector<22x128xf32>, vector<48x128xf32> -> vector<48x128xf32>
    %c0_17 = arith.constant 0 : index
    %c0_18 = arith.constant 0 : index
    %17 = vector.load %arg8[%c0_17, %c0_18] : memref<48x1xf32, #tpu.memory_space<vmem>>, vector<48x1xf32>
    %18 = vector.broadcast %17 : vector<48x1xf32> to vector<48x128xf32>
    %19 = arith.addf %16, %18 : vector<48x128xf32>
    %cst_19 = arith.constant 0.000000e+00 : f32
    %20 = vector.broadcast %cst_19 : f32 to vector<48x128xf32>
    %21 = arith.maximumf %19, %20 : vector<48x128xf32>
    %c0_20 = arith.constant 0 : index
    %c0_21 = arith.constant 0 : index
    %22 = vector.load %arg9[%c0_20, %c0_21] : memref<32x16xf32, #tpu.memory_space<vmem>>, vector<32x16xf32>
    %23 = vector.extract_strided_slice %21 {offsets = [0, 0], sizes = [16, 128], strides = [1, 1]} : vector<48x128xf32> to vector<16x128xf32>
    %cst_22 = arith.constant dense<0.000000e+00> : vector<32x128xf32>
    %24 = tpu.matmul %22, %23, %cst_22 {dimension_numbers = #tpu.dot_dimension_numbers<[1], [0], [0], [1], [0, 0, 1, 1], [], []>} : vector<32x16xf32>, vector<16x128xf32>, vector<32x128xf32> -> vector<32x128xf32>
    %c0_23 = arith.constant 0 : index
    %c0_24 = arith.constant 0 : index
    %25 = vector.load %arg10[%c0_23, %c0_24] : memref<32x1xf32, #tpu.memory_space<vmem>>, vector<32x1xf32>
    %26 = vector.broadcast %25 : vector<32x1xf32> to vector<32x128xf32>
    %27 = arith.addf %24, %26 : vector<32x128xf32>
    %c0_25 = arith.constant 0 : index
    %c0_26 = arith.constant 0 : index
    %28 = vector.load %arg11[%c0_25, %c0_26] : memref<64x32xf32, #tpu.memory_space<vmem>>, vector<64x32xf32>
    %29 = vector.extract_strided_slice %21 {offsets = [16, 0], sizes = [32, 128], strides = [1, 1]} : vector<48x128xf32> to vector<32x128xf32>
    %cst_27 = arith.constant dense<0.000000e+00> : vector<64x128xf32>
    %30 = tpu.matmul %28, %29, %cst_27 {dimension_numbers = #tpu.dot_dimension_numbers<[1], [0], [0], [1], [0, 0, 1, 1], [], []>} : vector<64x32xf32>, vector<32x128xf32>, vector<64x128xf32> -> vector<64x128xf32>
    %c0_28 = arith.constant 0 : index
    %c0_29 = arith.constant 0 : index
    %31 = vector.load %arg12[%c0_28, %c0_29] : memref<64x1xf32, #tpu.memory_space<vmem>>, vector<64x1xf32>
    %32 = vector.broadcast %31 : vector<64x1xf32> to vector<64x128xf32>
    %33 = arith.addf %30, %32 : vector<64x128xf32>
    %34 = arith.mulf %12, %27 : vector<32x128xf32>
    %cst_30 = arith.constant dense<0.000000e+00> : vector<128xf32>
    %35 = vector.multi_reduction <add>, %34, %cst_30 [0] : vector<32x128xf32> to vector<128xf32>
    %36 = vector.shape_cast %35 : vector<128xf32> to vector<1x128xf32>
    %c1 = arith.constant 1 : index
    %c0_31 = arith.constant 0 : index
    %c0_32 = arith.constant 0 : index
    %37 = vector.load %arg2[%c1, %c0_31, %c0_32] : memref<3x22x128xf32, #tpu.memory_space<vmem>>, vector<1x22x128xf32>
    %38 = vector.shape_cast %37 : vector<1x22x128xf32> to vector<22x128xf32>
    %c0_33 = arith.constant 0 : index
    %c0_34 = arith.constant 0 : index
    %39 = vector.load %arg7[%c0_33, %c0_34] : memref<48x22xf32, #tpu.memory_space<vmem>>, vector<48x22xf32>
    %cst_35 = arith.constant dense<0.000000e+00> : vector<48x128xf32>
    %40 = tpu.matmul %39, %38, %cst_35 {dimension_numbers = #tpu.dot_dimension_numbers<[1], [0], [0], [1], [0, 0, 1, 1], [], []>} : vector<48x22xf32>, vector<22x128xf32>, vector<48x128xf32> -> vector<48x128xf32>
    %c0_36 = arith.constant 0 : index
    %c0_37 = arith.constant 0 : index
    %41 = vector.load %arg8[%c0_36, %c0_37] : memref<48x1xf32, #tpu.memory_space<vmem>>, vector<48x1xf32>
    %42 = vector.broadcast %41 : vector<48x1xf32> to vector<48x128xf32>
    %43 = arith.addf %40, %42 : vector<48x128xf32>
    %cst_38 = arith.constant 0.000000e+00 : f32
    %44 = vector.broadcast %cst_38 : f32 to vector<48x128xf32>
    %45 = arith.maximumf %43, %44 : vector<48x128xf32>
    %c0_39 = arith.constant 0 : index
    %c0_40 = arith.constant 0 : index
    %46 = vector.load %arg9[%c0_39, %c0_40] : memref<32x16xf32, #tpu.memory_space<vmem>>, vector<32x16xf32>
    %47 = vector.extract_strided_slice %45 {offsets = [0, 0], sizes = [16, 128], strides = [1, 1]} : vector<48x128xf32> to vector<16x128xf32>
    %cst_41 = arith.constant dense<0.000000e+00> : vector<32x128xf32>
    %48 = tpu.matmul %46, %47, %cst_41 {dimension_numbers = #tpu.dot_dimension_numbers<[1], [0], [0], [1], [0, 0, 1, 1], [], []>} : vector<32x16xf32>, vector<16x128xf32>, vector<32x128xf32> -> vector<32x128xf32>
    %c0_42 = arith.constant 0 : index
    %c0_43 = arith.constant 0 : index
    %49 = vector.load %arg10[%c0_42, %c0_43] : memref<32x1xf32, #tpu.memory_space<vmem>>, vector<32x1xf32>
    %50 = vector.broadcast %49 : vector<32x1xf32> to vector<32x128xf32>
    %51 = arith.addf %48, %50 : vector<32x128xf32>
    %c0_44 = arith.constant 0 : index
    %c0_45 = arith.constant 0 : index
    %52 = vector.load %arg11[%c0_44, %c0_45] : memref<64x32xf32, #tpu.memory_space<vmem>>, vector<64x32xf32>
    %53 = vector.extract_strided_slice %45 {offsets = [16, 0], sizes = [32, 128], strides = [1, 1]} : vector<48x128xf32> to vector<32x128xf32>
    %cst_46 = arith.constant dense<0.000000e+00> : vector<64x128xf32>
    %54 = tpu.matmul %52, %53, %cst_46 {dimension_numbers = #tpu.dot_dimension_numbers<[1], [0], [0], [1], [0, 0, 1, 1], [], []>} : vector<64x32xf32>, vector<32x128xf32>, vector<64x128xf32> -> vector<64x128xf32>
    %c0_47 = arith.constant 0 : index
    %c0_48 = arith.constant 0 : index
    %55 = vector.load %arg12[%c0_47, %c0_48] : memref<64x1xf32, #tpu.memory_space<vmem>>, vector<64x1xf32>
    %56 = vector.broadcast %55 : vector<64x1xf32> to vector<64x128xf32>
    %57 = arith.addf %54, %56 : vector<64x128xf32>
    %58 = arith.mulf %12, %51 : vector<32x128xf32>
    %cst_49 = arith.constant dense<0.000000e+00> : vector<128xf32>
    %59 = vector.multi_reduction <add>, %58, %cst_49 [0] : vector<32x128xf32> to vector<128xf32>
    %60 = vector.shape_cast %59 : vector<128xf32> to vector<1x128xf32>
    %c2 = arith.constant 2 : index
    %c0_50 = arith.constant 0 : index
    %c0_51 = arith.constant 0 : index
    %61 = vector.load %arg2[%c2, %c0_50, %c0_51] : memref<3x22x128xf32, #tpu.memory_space<vmem>>, vector<1x22x128xf32>
    %62 = vector.shape_cast %61 : vector<1x22x128xf32> to vector<22x128xf32>
    %c0_52 = arith.constant 0 : index
    %c0_53 = arith.constant 0 : index
    %63 = vector.load %arg7[%c0_52, %c0_53] : memref<48x22xf32, #tpu.memory_space<vmem>>, vector<48x22xf32>
    %cst_54 = arith.constant dense<0.000000e+00> : vector<48x128xf32>
    %64 = tpu.matmul %63, %62, %cst_54 {dimension_numbers = #tpu.dot_dimension_numbers<[1], [0], [0], [1], [0, 0, 1, 1], [], []>} : vector<48x22xf32>, vector<22x128xf32>, vector<48x128xf32> -> vector<48x128xf32>
    %c0_55 = arith.constant 0 : index
    %c0_56 = arith.constant 0 : index
    %65 = vector.load %arg8[%c0_55, %c0_56] : memref<48x1xf32, #tpu.memory_space<vmem>>, vector<48x1xf32>
    %66 = vector.broadcast %65 : vector<48x1xf32> to vector<48x128xf32>
    %67 = arith.addf %64, %66 : vector<48x128xf32>
    %cst_57 = arith.constant 0.000000e+00 : f32
    %68 = vector.broadcast %cst_57 : f32 to vector<48x128xf32>
    %69 = arith.maximumf %67, %68 : vector<48x128xf32>
    %c0_58 = arith.constant 0 : index
    %c0_59 = arith.constant 0 : index
    %70 = vector.load %arg9[%c0_58, %c0_59] : memref<32x16xf32, #tpu.memory_space<vmem>>, vector<32x16xf32>
    %71 = vector.extract_strided_slice %69 {offsets = [0, 0], sizes = [16, 128], strides = [1, 1]} : vector<48x128xf32> to vector<16x128xf32>
    %cst_60 = arith.constant dense<0.000000e+00> : vector<32x128xf32>
    %72 = tpu.matmul %70, %71, %cst_60 {dimension_numbers = #tpu.dot_dimension_numbers<[1], [0], [0], [1], [0, 0, 1, 1], [], []>} : vector<32x16xf32>, vector<16x128xf32>, vector<32x128xf32> -> vector<32x128xf32>
    %c0_61 = arith.constant 0 : index
    %c0_62 = arith.constant 0 : index
    %73 = vector.load %arg10[%c0_61, %c0_62] : memref<32x1xf32, #tpu.memory_space<vmem>>, vector<32x1xf32>
    %74 = vector.broadcast %73 : vector<32x1xf32> to vector<32x128xf32>
    %75 = arith.addf %72, %74 : vector<32x128xf32>
    %c0_63 = arith.constant 0 : index
    %c0_64 = arith.constant 0 : index
    %76 = vector.load %arg11[%c0_63, %c0_64] : memref<64x32xf32, #tpu.memory_space<vmem>>, vector<64x32xf32>
    %77 = vector.extract_strided_slice %69 {offsets = [16, 0], sizes = [32, 128], strides = [1, 1]} : vector<48x128xf32> to vector<32x128xf32>
    %cst_65 = arith.constant dense<0.000000e+00> : vector<64x128xf32>
    %78 = tpu.matmul %76, %77, %cst_65 {dimension_numbers = #tpu.dot_dimension_numbers<[1], [0], [0], [1], [0, 0, 1, 1], [], []>} : vector<64x32xf32>, vector<32x128xf32>, vector<64x128xf32> -> vector<64x128xf32>
    %c0_66 = arith.constant 0 : index
    %c0_67 = arith.constant 0 : index
    %79 = vector.load %arg12[%c0_66, %c0_67] : memref<64x1xf32, #tpu.memory_space<vmem>>, vector<64x1xf32>
    %80 = vector.broadcast %79 : vector<64x1xf32> to vector<64x128xf32>
    %81 = arith.addf %78, %80 : vector<64x128xf32>
    %82 = arith.mulf %12, %75 : vector<32x128xf32>
    %cst_68 = arith.constant dense<0.000000e+00> : vector<128xf32>
    %83 = vector.multi_reduction <add>, %82, %cst_68 [0] : vector<32x128xf32> to vector<128xf32>
    %84 = vector.shape_cast %83 : vector<128xf32> to vector<1x128xf32>
    %85 = arith.maximumf %36, %60 : vector<1x128xf32>
    %86 = arith.maximumf %85, %84 : vector<1x128xf32>
    %87 = arith.subf %36, %86 : vector<1x128xf32>
    %88 = math.exp %87 : vector<1x128xf32>
    %89 = arith.subf %60, %86 : vector<1x128xf32>
    %90 = math.exp %89 : vector<1x128xf32>
    %91 = arith.subf %84, %86 : vector<1x128xf32>
    %92 = math.exp %91 : vector<1x128xf32>
    %93 = arith.addf %88, %90 : vector<1x128xf32>
    %94 = arith.addf %93, %92 : vector<1x128xf32>
    %95 = tpu.reciprocal %94 : vector<1x128xf32> -> vector<1x128xf32>
    %96 = arith.mulf %88, %95 : vector<1x128xf32>
    %97 = arith.mulf %90, %95 : vector<1x128xf32>
    %98 = arith.mulf %92, %95 : vector<1x128xf32>
    %99 = vector.broadcast %96 : vector<1x128xf32> to vector<64x128xf32>
    %100 = arith.mulf %99, %33 : vector<64x128xf32>
    %101 = vector.broadcast %97 : vector<1x128xf32> to vector<64x128xf32>
    %102 = arith.mulf %101, %57 : vector<64x128xf32>
    %103 = arith.addf %100, %102 : vector<64x128xf32>
    %104 = vector.broadcast %98 : vector<1x128xf32> to vector<64x128xf32>
    %105 = arith.mulf %104, %81 : vector<64x128xf32>
    %106 = arith.addf %103, %105 : vector<64x128xf32>
    %c0_69 = arith.constant 0 : index
    %c0_70 = arith.constant 0 : index
    %107 = vector.load %arg13[%c0_69, %c0_70] : memref<64x128xf32, #tpu.memory_space<vmem>>, vector<64x128xf32>
    tpu.vector_store %arg13[%c0_69, %c0_70], %106 {strides = array<i32>} : memref<64x128xf32, #tpu.memory_space<vmem>>, vector<64x128xf32>,
    %c0_71 = arith.constant 0 : index
    %c0_72 = arith.constant 0 : index
    %108 = vector.load %arg14[%c0_71, %c0_72] : memref<3x128xf32, #tpu.memory_space<vmem>>, vector<1x128xf32>
    tpu.vector_store %arg14[%c0_71, %c0_72], %96 {strides = array<i32>} : memref<3x128xf32, #tpu.memory_space<vmem>>, vector<1x128xf32>,
    %c1_73 = arith.constant 1 : index
    %c0_74 = arith.constant 0 : index
    %109 = vector.load %arg14[%c1_73, %c0_74] : memref<3x128xf32, #tpu.memory_space<vmem>>, vector<1x128xf32>
    tpu.vector_store %arg14[%c1_73, %c0_74], %97 {strides = array<i32>} : memref<3x128xf32, #tpu.memory_space<vmem>>, vector<1x128xf32>,
    %c2_75 = arith.constant 2 : index
    %c0_76 = arith.constant 0 : index
    %110 = vector.load %arg14[%c2_75, %c0_76] : memref<3x128xf32, #tpu.memory_space<vmem>>, vector<1x128xf32>
    tpu.vector_store %arg14[%c2_75, %c0_76], %98 {strides = array<i32>} : memref<3x128xf32, #tpu.memory_space<vmem>>, vector<1x128xf32>,
    return
  }
  func.func @transform_0(%arg0: i32) -> (i32, i32) {
    %c0_i32 = arith.constant 0 : i32
    %c0_i32_0 = arith.constant 0 : i32
    return %c0_i32, %arg0 : i32, i32
  }
  func.func @transform_1(%arg0: i32) -> (i32, i32, i32) {
    %c0_i32 = arith.constant 0 : i32
    %c0_i32_0 = arith.constant 0 : i32
    %c0_i32_1 = arith.constant 0 : i32
    return %c0_i32, %c0_i32_0, %arg0 : i32, i32, i32
  }
  func.func @transform_2(%arg0: i32) -> (i32, i32) {
    %c0_i32 = arith.constant 0 : i32
    %c0_i32_0 = arith.constant 0 : i32
    %c0_i32_1 = arith.constant 0 : i32
    return %c0_i32, %c0_i32_0 : i32, i32
  }
  func.func @transform_3(%arg0: i32) -> (i32, i32) {
    %c0_i32 = arith.constant 0 : i32
    %c0_i32_0 = arith.constant 0 : i32
    %c0_i32_1 = arith.constant 0 : i32
    return %c0_i32, %c0_i32_0 : i32, i32
  }
  func.func @transform_4(%arg0: i32) -> (i32, i32) {
    %c0_i32 = arith.constant 0 : i32
    %c0_i32_0 = arith.constant 0 : i32
    %c0_i32_1 = arith.constant 0 : i32
    return %c0_i32, %c0_i32_0 : i32, i32
  }
  func.func @transform_5(%arg0: i32) -> (i32, i32) {
    %c0_i32 = arith.constant 0 : i32
    %c0_i32_0 = arith.constant 0 : i32
    %c0_i32_1 = arith.constant 0 : i32
    return %c0_i32, %c0_i32_0 : i32, i32
  }
  func.func @transform_6(%arg0: i32) -> (i32, i32) {
    %c0_i32 = arith.constant 0 : i32
    %c0_i32_0 = arith.constant 0 : i32
    %c0_i32_1 = arith.constant 0 : i32
    return %c0_i32, %c0_i32_0 : i32, i32
  }
  func.func @transform_7(%arg0: i32) -> (i32, i32) {
    %c0_i32 = arith.constant 0 : i32
    %c0_i32_0 = arith.constant 0 : i32
    %c0_i32_1 = arith.constant 0 : i32
    return %c0_i32, %c0_i32_0 : i32, i32
  }
  func.func @transform_8(%arg0: i32) -> (i32, i32) {
    %c0_i32 = arith.constant 0 : i32
    %c0_i32_0 = arith.constant 0 : i32
    %c0_i32_1 = arith.constant 0 : i32
    return %c0_i32, %c0_i32_0 : i32, i32
  }
  func.func @transform_9(%arg0: i32) -> (i32, i32) {
    %c0_i32 = arith.constant 0 : i32
    %c0_i32_0 = arith.constant 0 : i32
    %c0_i32_1 = arith.constant 0 : i32
    return %c0_i32, %c0_i32_0 : i32, i32
  }
  func.func @transform_10(%arg0: i32) -> (i32, i32) {
    %c0_i32 = arith.constant 0 : i32
    %c0_i32_0 = arith.constant 0 : i32
    %c0_i32_1 = arith.constant 0 : i32
    return %c0_i32, %c0_i32_0 : i32, i32
  }
  func.func @transform_11(%arg0: i32) -> (i32, i32) {
    %c0_i32 = arith.constant 0 : i32
    %c0_i32_0 = arith.constant 0 : i32
    %c0_i32_1 = arith.constant 0 : i32
    return %c0_i32, %c0_i32_0 : i32, i32
  }
  func.func @transform_12(%arg0: i32) -> (i32, i32) {
    %c0_i32 = arith.constant 0 : i32
    %c0_i32_0 = arith.constant 0 : i32
    return %c0_i32, %arg0 : i32, i32
  }
  func.func @transform_13(%arg0: i32) -> (i32, i32) {
    %c0_i32 = arith.constant 0 : i32
    %c0_i32_0 = arith.constant 0 : i32
    return %c0_i32, %arg0 : i32, i32
  }
}

</mosaic_0001>

<llo_original>
// kernel: tpu_custom_call.1
$region0: #{tpu_custom_call.1}
  #allocation0 [shape = 'u32[]', space=smem, size = 0x4, offset = 0x4, fixed_abs, tag = 'smem constant byte address 0x4 - core index']
  #allocation1 [shape = 'u32[144,128]{1,0:T(1,128)}', space=vmem, size = 0x12000, scoped, tag = 'internal scratch']
  %s0 = inlined_call_operand.vmem [shape: f32[22,128], index: 0, kind: input, shape index: {}]
  %s1 = inlined_call_operand.vmem [shape: f32[3,22,128], index: 1, kind: input, shape index: {}]
  %s2 = inlined_call_operand.vmem [shape: f32[16,22], index: 2, kind: input, shape index: {}]
  %s3 = inlined_call_operand.vmem [shape: f32[16,1], index: 3, kind: input, shape index: {}]
  %s4 = inlined_call_operand.vmem [shape: f32[32,16], index: 4, kind: input, shape index: {}]
  %s5 = inlined_call_operand.vmem [shape: f32[32,1], index: 5, kind: input, shape index: {}]
  %s6 = inlined_call_operand.vmem [shape: f32[48,22], index: 6, kind: input, shape index: {}]
  %s7 = inlined_call_operand.vmem [shape: f32[48,1], index: 7, kind: input, shape index: {}]
  %s8 = inlined_call_operand.vmem [shape: f32[32,16], index: 8, kind: input, shape index: {}]
  %s9 = inlined_call_operand.vmem [shape: f32[32,1], index: 9, kind: input, shape index: {}]
  %s10 = inlined_call_operand.vmem [shape: f32[64,32], index: 10, kind: input, shape index: {}]
  %s11 = inlined_call_operand.vmem [shape: f32[64,1], index: 11, kind: input, shape index: {}]
  %s12 = inlined_call_operand.hbm [shape: f32[64,128], index: 12, kind: output, shape index: {0}]
  %s13 = inlined_call_operand.hbm [shape: f32[3,128], index: 13, kind: output, shape index: {1}]
  %14 = xla_tuple %s12, %s13
  %s15 = sld [smem:[#allocation0]]
  $region66: #{tpu_custom_call.1} parent=0
    _
  %s17 = ssub.s32 1, %s15
  %s18 = scalar_select 0, %s17, %s15
  $region1: #{tpu_custom_call.1} parent=0
    #allocation2 [shape = 'u8[32768]{0}', space=vmem, size = 0x8000, scoped, tag = 'output window, operand 0, single buffered']
    #allocation3 [shape = 's32[1]{0}', space=sflag, size = 0x4, scoped, tag = 'scoped memory for tpu_custom_call.1']
    #allocation4 [shape = 'u8[2048]{0}', space=vmem, size = 0x800, scoped, tag = 'output window, operand 1, single buffered']
    #allocation5 [shape = 's32[1]{0}', space=sflag, size = 0x4, scoped, tag = 'scoped memory for tpu_custom_call.1']
    %19 = vsyncpa [#allocation3], 0
    %20 = vsyncpa [#allocation5], 0
    // Predicated region
    $region2: #{tpu_custom_call.1} parent=1 // pred_check
      _
    $region3: #{tpu_custom_call.1} parent=1 // pred_check_branch
      %22 = sbr.rel (0) target = $region5
    $region4: #{tpu_custom_call.1} parent=1 // pred_region
      _
    $region5: #{tpu_custom_call.1} parent=1 // pred_fallthru
      _
    // Predicated region
    $region6: #{tpu_custom_call.1} parent=1 // pred_check
      _
    $region7: #{tpu_custom_call.1} parent=1 // pred_check_branch
      %24 = sbr.rel (0) target = $region9
    $region8: #{tpu_custom_call.1} parent=1 // pred_region
      _
    $region9: #{tpu_custom_call.1} parent=1 // pred_fallthru
      _
    // Predicated region
    $region10: #{tpu_custom_call.1} parent=1 // pred_check
      _
    $region11: #{tpu_custom_call.1} parent=1 // pred_check_branch
      %26 = sbr.rel (0) target = $region13
    $region12: #{tpu_custom_call.1} parent=1 // pred_region
      _
    $region13: #{tpu_custom_call.1} parent=1 // pred_fallthru
      _
    // Predicated region
    $region14: #{tpu_custom_call.1} parent=1 // pred_check
      _
    $region15: #{tpu_custom_call.1} parent=1 // pred_check_branch
      %28 = sbr.rel (0) target = $region17
    $region16: #{tpu_custom_call.1} parent=1 // pred_region
      _
    $region17: #{tpu_custom_call.1} parent=1 // pred_fallthru
      _
    // Predicated region
    $region18: #{tpu_custom_call.1} parent=1 // pred_check
      _
    $region19: #{tpu_custom_call.1} parent=1 // pred_check_branch
      %30 = sbr.rel (0) target = $region21
    $region20: #{tpu_custom_call.1} parent=1 // pred_region
      _
    $region21: #{tpu_custom_call.1} parent=1 // pred_fallthru
      _
    // Predicated region
    $region22: #{tpu_custom_call.1} parent=1 // pred_check
      _
    $region23: #{tpu_custom_call.1} parent=1 // pred_check_branch
      %32 = sbr.rel (0) target = $region25
    $region24: #{tpu_custom_call.1} parent=1 // pred_region
      _
    $region25: #{tpu_custom_call.1} parent=1 // pred_fallthru
      _
    // Predicated region
    $region26: #{tpu_custom_call.1} parent=1 // pred_check
      _
    $region27: #{tpu_custom_call.1} parent=1 // pred_check_branch
      %34 = sbr.rel (0) target = $region29
    $region28: #{tpu_custom_call.1} parent=1 // pred_region
      _
    $region29: #{tpu_custom_call.1} parent=1 // pred_fallthru
      _
    // Predicated region
    $region30: #{tpu_custom_call.1} parent=1 // pred_check
      _
    $region31: #{tpu_custom_call.1} parent=1 // pred_check_branch
      %36 = sbr.rel (0) target = $region33
    $region32: #{tpu_custom_call.1} parent=1 // pred_region
      _
    $region33: #{tpu_custom_call.1} parent=1 // pred_fallthru
      _
    // Predicated region
    $region34: #{tpu_custom_call.1} parent=1 // pred_check
      _
    $region35: #{tpu_custom_call.1} parent=1 // pred_check_branch
      %38 = sbr.rel (0) target = $region37
    $region36: #{tpu_custom_call.1} parent=1 // pred_region
      _
    $region37: #{tpu_custom_call.1} parent=1 // pred_fallthru
      _
    // Predicated region
    $region38: #{tpu_custom_call.1} parent=1 // pred_check
      _
    $region39: #{tpu_custom_call.1} parent=1 // pred_check_branch
      %40 = sbr.rel (0) target = $region41
    $region40: #{tpu_custom_call.1} parent=1 // pred_region
      _
    $region41: #{tpu_custom_call.1} parent=1 // pred_fallthru
      _
    // Predicated region
    $region42: #{tpu_custom_call.1} parent=1 // pred_check
      _
    $region43: #{tpu_custom_call.1} parent=1 // pred_check_branch
      %42 = sbr.rel (0) target = $region45
    $region44: #{tpu_custom_call.1} parent=1 // pred_region
      _
    $region45: #{tpu_custom_call.1} parent=1 // pred_fallthru
      _
    // Predicated region
    $region46: #{tpu_custom_call.1} parent=1 // pred_check
      _
    $region47: #{tpu_custom_call.1} parent=1 // pred_check_branch
      %44 = sbr.rel (0) target = $region49
    $region48: #{tpu_custom_call.1} parent=1 // pred_region
      _
    $region49: #{tpu_custom_call.1} parent=1 // pred_fallthru
      _
    %v45 = vld [vmem:[%s0] sm:$0xff]
    %v46 = vld [vmem:[%s0 + $0x8] sm:$0xff]
    %v47 = vld [vmem:[%s0 + $0x10] sm:$0x3f]
    %v48 = vld [vmem:[%s2] sm:$0xff]
    %v49 = vld [vmem:[%s2 + $0x8] sm:$0xff]
    %v50 = vld [vmem:[%s3] sm:$0xff]
    %v51 = vld [vmem:[%s3 + $0x8] sm:$0xff]
    %53 = vset.pattern.permute.xlu0 0
    %54 = vperm.xlu0 %53, %v50
    %v55 = vpop.permute.xlu0 %54
    %58 = vset.pattern.permute.xlu0 0
    %59 = vperm.xlu0 %58, %v51
    %v60 = vpop.permute.xlu0 %59
    %vm62 = vcmask 179200
    %v64 = vsel %vm62, %v48, 0
    %v67 = vsel %vm62, %v49, 0
    %vm69 = vcmask 1045504
    %v71 = vsel %vm69, %v47, 0
    %73 = vmatprep.subr.mxu0 0.0
    %74 = vmatpush1.msra.mxu0 %v45
    %75 = vmatprep.subr.mxu0 0.0
    %76 = vmatpush1.msra.mxu0 %v46
    %77 = vmatprep.subr.mxu0 0.0
    %78 = vmatpush1.msra.mxu0 %v71
    %79 = vmatprep.subr.mxu0 0.0
    %80 = vmatpush1.msra.mxu0 0.0
    %81 = vmatprep.subr.mxu0 0.0
    %82 = vmatpush1.msra.mxu0 0.0
    %83 = vmatprep.subr.mxu0 0.0
    %84 = vmatpush1.msra.mxu0 0.0
    %85 = vmatprep.subr.mxu0 0.0
    %86 = vmatpush1.msra.mxu0 0.0
    %87 = vmatprep.subr.mxu0 0.0
    %88 = vmatpush1.msra.mxu0 0.0
    %89 = vmatprep.subr.mxu0 0.0
    %90 = vmatpush1.msra.mxu0 0.0
    %91 = vmatprep.subr.mxu0 0.0
    %92 = vmatpush1.msra.mxu0 0.0
    %93 = vmatprep.subr.mxu0 0.0
    %94 = vmatpush1.msra.mxu0 0.0
    %95 = vmatprep.subr.mxu0 0.0
    %96 = vmatpush1.msra.mxu0 0.0
    %97 = vmatprep.subr.mxu0 0.0
    %98 = vmatpush1.msra.mxu0 0.0
    %99 = vmatprep.subr.mxu0 0.0
    %100 = vmatpush1.msra.mxu0 0.0
    %101 = vmatprep.subr.mxu0 0.0
    %102 = vmatpush1.msra.mxu0 0.0
    %103 = vmatprep.subr.mxu0 0.0
    %104 = vmatpush1.msra.mxu0 0.0
    %105 = vmatprep.subr.mxu0 0.0
    %106 = vmatpush1.msra.mxu0 0.0
    %107 = vmatprep.subr.mxu0 0.0
    %108 = vmatpush1.msra.mxu0 0.0
    %109 = vmatprep.subr.mxu0 0.0
    %110 = vmatpush1.msra.mxu0 0.0
    %111 = vmatprep.subr.mxu0 0.0
    %112 = vmatpush1.msra.mxu0 0.0
    %113 = vmatprep.subr.mxu0 0.0
    %114 = vmatpush1.msra.mxu0 0.0
    %115 = vmatprep.subr.mxu0 0.0
    %116 = vmatpush1.msra.mxu0 0.0
    %117 = vmatprep.subr.mxu0 0.0
    %118 = vmatpush1.msra.mxu0 0.0
    %119 = vmatprep.subr.mxu0 0.0
    %120 = vmatpush1.msra.mxu0 0.0
    %121 = vmatprep.subr.mxu0 0.0
    %122 = vmatpush1.msra.mxu0 0.0
    %123 = vmatprep.subr.mxu0 0.0
    %124 = vmatpush1.msra.mxu0 0.0
    %125 = vmatprep.subr.mxu0 0.0
    %126 = vmatpush1.msra.mxu0 0.0
    %127 = vmatprep.subr.mxu0 0.0
    %128 = vmatpush1.msra.mxu0 0.0
    %129 = vmatprep.subr.mxu0 0.0
    %130 = vmatpush1.msra.mxu0 0.0
    %131 = vmatprep.subr.mxu0 0.0
    %132 = vmatpush1.msra.mxu0 0.0
    %133 = vmatprep.subr.mxu0 0.0
    %134 = vmatpush1.msra.mxu0 0.0
    %135 = vmatprep.subr.mxu0 0.0
    %136 = vmatpush1.msra.mxu0 0.0
    %137 = vmatprep.mubr.f32.mxu0 0.0
    %138 = vmatmul.mubr.f32.gmra.mrb[0].mxu0 %v64
    %v139 = vpop.f32.mrb[0].mxu0
    %v140 = vadd.f32 %v55, %v139
    %v141 = vpop.f32.mrb[0].mxu0
    %142 = vmatprep.mubr.f32.mxu0 0.0
    %143 = vmatmul.mubr.f32.gmra.mrb[0].mxu0 %v67
    %v144 = vpop.f32.mrb[0].mxu0
    %v145 = vadd.f32 %v60, %v144
    %v146 = vpop.f32.mrb[0].mxu0
    %147 = vdwg.mxu0
    %v148 = vmax.f32 %v140, 0.0
    %v149 = vmax.f32 %v145, 0.0
    %v150 = vld [vmem:[%s4] sm:$0xff]
    %v151 = vld [vmem:[%s4 + $0x8] sm:$0xff]
    %v152 = vld [vmem:[%s4 + $0x10] sm:$0xff]
    %v153 = vld [vmem:[%s4 + $0x18] sm:$0xff]
    %v154 = vld [vmem:[%s5] sm:$0xff]
    %v155 = vld [vmem:[%s5 + $0x8] sm:$0xff]
    %v156 = vld [vmem:[%s5 + $0x10] sm:$0xff]
    %v157 = vld [vmem:[%s5 + $0x18] sm:$0xff]
    %159 = vset.pattern.permute.xlu0 0
    %160 = vperm.xlu0 %159, %v154
    %v161 = vpop.permute.xlu0 %160
    %164 = vset.pattern.permute.xlu0 0
    %165 = vperm.xlu0 %164, %v155
    %v166 = vpop.permute.xlu0 %165
    %169 = vset.pattern.permute.xlu0 0
    %170 = vperm.xlu0 %169, %v156
    %v171 = vpop.permute.xlu0 %170
    %174 = vset.pattern.permute.xlu0 0
    %175 = vperm.xlu0 %174, %v157
    %v176 = vpop.permute.xlu0 %175
    %vm178 = vcmask 130048
    %v180 = vsel %vm178, %v150, 0
    %v183 = vsel %vm178, %v151, 0
    %v186 = vsel %vm178, %v152, 0
    %v189 = vsel %vm178, %v153, 0
    %191 = vmatprep.subr.mxu0 0.0
    %192 = vmatpush1.msra.mxu0 %v148
    %193 = vmatprep.subr.mxu0 0.0
    %194 = vmatpush1.msra.mxu0 %v149
    %195 = vmatprep.subr.mxu0 0.0
    %196 = vmatpush1.msra.mxu0 0.0
    %197 = vmatprep.subr.mxu0 0.0
    %198 = vmatpush1.msra.mxu0 0.0
    %199 = vmatprep.subr.mxu0 0.0
    %200 = vmatpush1.msra.mxu0 0.0
    %201 = vmatprep.subr.mxu0 0.0
    %202 = vmatpush1.msra.mxu0 0.0
    %203 = vmatprep.subr.mxu0 0.0
    %204 = vmatpush1.msra.mxu0 0.0
    %205 = vmatprep.subr.mxu0 0.0
    %206 = vmatpush1.msra.mxu0 0.0
    %207 = vmatprep.subr.mxu0 0.0
    %208 = vmatpush1.msra.mxu0 0.0
    %209 = vmatprep.subr.mxu0 0.0
    %210 = vmatpush1.msra.mxu0 0.0
    %211 = vmatprep.subr.mxu0 0.0
    %212 = vmatpush1.msra.mxu0 0.0
    %213 = vmatprep.subr.mxu0 0.0
    %214 = vmatpush1.msra.mxu0 0.0
    %215 = vmatprep.subr.mxu0 0.0
    %216 = vmatpush1.msra.mxu0 0.0
    %217 = vmatprep.subr.mxu0 0.0
    %218 = vmatpush1.msra.mxu0 0.0
    %219 = vmatprep.subr.mxu0 0.0
    %220 = vmatpush1.msra.mxu0 0.0
    %221 = vmatprep.subr.mxu0 0.0
    %222 = vmatpush1.msra.mxu0 0.0
    %223 = vmatprep.subr.mxu0 0.0
    %224 = vmatpush1.msra.mxu0 0.0
    %225 = vmatprep.subr.mxu0 0.0
    %226 = vmatpush1.msra.mxu0 0.0
    %227 = vmatprep.subr.mxu0 0.0
    %228 = vmatpush1.msra.mxu0 0.0
    %229 = vmatprep.subr.mxu0 0.0
    %230 = vmatpush1.msra.mxu0 0.0
    %231 = vmatprep.subr.mxu0 0.0
    %232 = vmatpush1.msra.mxu0 0.0
    %233 = vmatprep.subr.mxu0 0.0
    %234 = vmatpush1.msra.mxu0 0.0
    %235 = vmatprep.subr.mxu0 0.0
    %236 = vmatpush1.msra.mxu0 0.0
    %237 = vmatprep.subr.mxu0 0.0
    %238 = vmatpush1.msra.mxu0 0.0
    %239 = vmatprep.subr.mxu0 0.0
    %240 = vmatpush1.msra.mxu0 0.0
    %241 = vmatprep.subr.mxu0 0.0
    %242 = vmatpush1.msra.mxu0 0.0
    %243 = vmatprep.subr.mxu0 0.0
    %244 = vmatpush1.msra.mxu0 0.0
    %245 = vmatprep.subr.mxu0 0.0
    %246 = vmatpush1.msra.mxu0 0.0
    %247 = vmatprep.subr.mxu0 0.0
    %248 = vmatpush1.msra.mxu0 0.0
    %249 = vmatprep.subr.mxu0 0.0
    %250 = vmatpush1.msra.mxu0 0.0
    %251 = vmatprep.subr.mxu0 0.0
    %252 = vmatpush1.msra.mxu0 0.0
    %253 = vmatprep.subr.mxu0 0.0
    %254 = vmatpush1.msra.mxu0 0.0
    %255 = vmatprep.mubr.f32.mxu0 0.0
    %256 = vmatmul.mubr.f32.gmra.mrb[0].mxu0 %v180
    %v257 = vpop.f32.mrb[0].mxu0
    %v258 = vadd.f32 %v161, %v257
    %v259 = vpop.f32.mrb[0].mxu0
    %260 = vmatprep.mubr.f32.mxu0 0.0
    %261 = vmatmul.mubr.f32.gmra.mrb[0].mxu0 %v183
    %v262 = vpop.f32.mrb[0].mxu0
    %v263 = vadd.f32 %v166, %v262
    %v264 = vpop.f32.mrb[0].mxu0
    %265 = vmatprep.mubr.f32.mxu0 0.0
    %266 = vmatmul.mubr.f32.gmra.mrb[0].mxu0 %v186
    %v267 = vpop.f32.mrb[0].mxu0
    %v268 = vadd.f32 %v171, %v267
    %v269 = vpop.f32.mrb[0].mxu0
    %270 = vmatprep.mubr.f32.mxu0 0.0
    %271 = vmatmul.mubr.f32.gmra.mrb[0].mxu0 %v189
    %v272 = vpop.f32.mrb[0].mxu0
    %v273 = vadd.f32 %v176, %v272
    %v274 = vpop.f32.mrb[0].mxu0
    %275 = vdwg.mxu0
    %v276 = vld [vmem:[%s1] sm:$0xff]
    %v277 = vld [vmem:[%s1 + $0x8] sm:$0xff]
    %v278 = vld [vmem:[%s1 + $0x10] sm:$0x3f]
    %v279 = vld [vmem:[%s6] sm:$0xff]
    %v280 = vld [vmem:[%s6 + $0x8] sm:$0xff]
    %v281 = vld [vmem:[%s6 + $0x10] sm:$0xff]
    %v282 = vld [vmem:[%s6 + $0x18] sm:$0xff]
    %v283 = vld [vmem:[%s6 + $0x20] sm:$0xff]
    %v284 = vld [vmem:[%s6 + $0x28] sm:$0xff]
    %v285 = vld [vmem:[%s7] sm:$0xff]
    %v286 = vld [vmem:[%s7 + $0x8] sm:$0xff]
    %v287 = vld [vmem:[%s7 + $0x10] sm:$0xff]
    %v288 = vld [vmem:[%s7 + $0x18] sm:$0xff]
    %v289 = vld [vmem:[%s7 + $0x20] sm:$0xff]
    %v290 = vld [vmem:[%s7 + $0x28] sm:$0xff]
    %292 = vset.pattern.permute.xlu0 0
    %293 = vperm.xlu0 %292, %v285
    %v294 = vpop.permute.xlu0 %293
    %297 = vset.pattern.permute.xlu0 0
    %298 = vperm.xlu0 %297, %v286
    %v299 = vpop.permute.xlu0 %298
    %302 = vset.pattern.permute.xlu0 0
    %303 = vperm.xlu0 %302, %v287
    %v304 = vpop.permute.xlu0 %303
    %307 = vset.pattern.permute.xlu0 0
    %308 = vperm.xlu0 %307, %v288
    %v309 = vpop.permute.xlu0 %308
    %312 = vset.pattern.permute.xlu0 0
    %313 = vperm.xlu0 %312, %v289
    %v314 = vpop.permute.xlu0 %313
    %317 = vset.pattern.permute.xlu0 0
    %318 = vperm.xlu0 %317, %v290
    %v319 = vpop.permute.xlu0 %318
    %v322 = vsel %vm62, %v279, 0
    %v325 = vsel %vm62, %v280, 0
    %v328 = vsel %vm62, %v281, 0
    %v331 = vsel %vm62, %v282, 0
    %v334 = vsel %vm62, %v283, 0
    %v337 = vsel %vm62, %v284, 0
    %v340 = vsel %vm69, %v278, 0
    %342 = vmatprep.subr.mxu0 0.0
    %343 = vmatpush1.msra.mxu0 %v276
    %344 = vmatprep.subr.mxu0 0.0
    %345 = vmatpush1.msra.mxu0 %v277
    %346 = vmatprep.subr.mxu0 0.0
    %347 = vmatpush1.msra.mxu0 %v340
    %348 = vmatprep.subr.mxu0 0.0
    %349 = vmatpush1.msra.mxu0 0.0
    %350 = vmatprep.subr.mxu0 0.0
    %351 = vmatpush1.msra.mxu0 0.0
    %352 = vmatprep.subr.mxu0 0.0
    %353 = vmatpush1.msra.mxu0 0.0
    %354 = vmatprep.subr.mxu0 0.0
    %355 = vmatpush1.msra.mxu0 0.0
    %356 = vmatprep.subr.mxu0 0.0
    %357 = vmatpush1.msra.mxu0 0.0
    %358 = vmatprep.subr.mxu0 0.0
    %359 = vmatpush1.msra.mxu0 0.0
    %360 = vmatprep.subr.mxu0 0.0
    %361 = vmatpush1.msra.mxu0 0.0
    %362 = vmatprep.subr.mxu0 0.0
    %363 = vmatpush1.msra.mxu0 0.0
    %364 = vmatprep.subr.mxu0 0.0
    %365 = vmatpush1.msra.mxu0 0.0
    %366 = vmatprep.subr.mxu0 0.0
    %367 = vmatpush1.msra.mxu0 0.0
    %368 = vmatprep.subr.mxu0 0.0
    %369 = vmatpush1.msra.mxu0 0.0
    %370 = vmatprep.subr.mxu0 0.0
    %371 = vmatpush1.msra.mxu0 0.0
    %372 = vmatprep.subr.mxu0 0.0
    %373 = vmatpush1.msra.mxu0 0.0
    %374 = vmatprep.subr.mxu0 0.0
    %375 = vmatpush1.msra.mxu0 0.0
    %376 = vmatprep.subr.mxu0 0.0
    %377 = vmatpush1.msra.mxu0 0.0
    %378 = vmatprep.subr.mxu0 0.0
    %379 = vmatpush1.msra.mxu0 0.0
    %380 = vmatprep.subr.mxu0 0.0
    %381 = vmatpush1.msra.mxu0 0.0
    %382 = vmatprep.subr.mxu0 0.0
    %383 = vmatpush1.msra.mxu0 0.0
    %384 = vmatprep.subr.mxu0 0.0
    %385 = vmatpush1.msra.mxu0 0.0
    %386 = vmatprep.subr.mxu0 0.0
    %387 = vmatpush1.msra.mxu0 0.0
    %388 = vmatprep.subr.mxu0 0.0
    %389 = vmatpush1.msra.mxu0 0.0
    %390 = vmatprep.subr.mxu0 0.0
    %391 = vmatpush1.msra.mxu0 0.0
    %392 = vmatprep.subr.mxu0 0.0
    %393 = vmatpush1.msra.mxu0 0.0
    %394 = vmatprep.subr.mxu0 0.0
    %395 = vmatpush1.msra.mxu0 0.0
    %396 = vmatprep.subr.mxu0 0.0
    %397 = vmatpush1.msra.mxu0 0.0
    %398 = vmatprep.subr.mxu0 0.0
    %399 = vmatpush1.msra.mxu0 0.0
    %400 = vmatprep.subr.mxu0 0.0
    %401 = vmatpush1.msra.mxu0 0.0
    %402 = vmatprep.subr.mxu0 0.0
    %403 = vmatpush1.msra.mxu0 0.0
    %404 = vmatprep.subr.mxu0 0.0
    %405 = vmatpush1.msra.mxu0 0.0
    %406 = vmatprep.mubr.f32.mxu0 0.0
    %407 = vmatmul.mubr.f32.gmra.mrb[0].mxu0 %v322
    %v408 = vpop.f32.mrb[0].mxu0
    %v409 = vadd.f32 %v294, %v408
    %v410 = vpop.f32.mrb[0].mxu0
    %411 = vmatprep.mubr.f32.mxu0 0.0
    %412 = vmatmul.mubr.f32.gmra.mrb[0].mxu0 %v325
    %v413 = vpop.f32.mrb[0].mxu0
    %v414 = vadd.f32 %v299, %v413
    %v415 = vpop.f32.mrb[0].mxu0
    %416 = vmatprep.mubr.f32.mxu0 0.0
    %417 = vmatmul.mubr.f32.gmra.mrb[0].mxu0 %v328
    %v418 = vpop.f32.mrb[0].mxu0
    %v419 = vadd.f32 %v304, %v418
    %v420 = vpop.f32.mrb[0].mxu0
    %421 = vmatprep.mubr.f32.mxu0 0.0
    %422 = vmatmul.mubr.f32.gmra.mrb[0].mxu0 %v331
    %v423 = vpop.f32.mrb[0].mxu0
    %v424 = vadd.f32 %v309, %v423
    %v425 = vpop.f32.mrb[0].mxu0
    %426 = vmatprep.mubr.f32.mxu0 0.0
    %427 = vmatmul.mubr.f32.gmra.mrb[0].mxu0 %v334
    %v428 = vpop.f32.mrb[0].mxu0
    %v429 = vadd.f32 %v314, %v428
    %v430 = vpop.f32.mrb[0].mxu0
    %431 = vmatprep.mubr.f32.mxu0 0.0
    %432 = vmatmul.mubr.f32.gmra.mrb[0].mxu0 %v337
    %v433 = vpop.f32.mrb[0].mxu0
    %v434 = vadd.f32 %v319, %v433
    %v435 = vpop.f32.mrb[0].mxu0
    %436 = vdwg.mxu0
    %v437 = vmax.f32 %v409, 0.0
    %v438 = vmax.f32 %v414, 0.0
    %v439 = vmax.f32 %v419, 0.0
    %v440 = vmax.f32 %v424, 0.0
    %v441 = vmax.f32 %v429, 0.0
    %v442 = vmax.f32 %v434, 0.0
    %v443 = vld [vmem:[%s8] sm:$0xff]
    %v444 = vld [vmem:[%s8 + $0x8] sm:$0xff]
    %v445 = vld [vmem:[%s8 + $0x10] sm:$0xff]
    %v446 = vld [vmem:[%s8 + $0x18] sm:$0xff]
    %v447 = vld [vmem:[%s9] sm:$0xff]
    %v448 = vld [vmem:[%s9 + $0x8] sm:$0xff]
    %v449 = vld [vmem:[%s9 + $0x10] sm:$0xff]
    %v450 = vld [vmem:[%s9 + $0x18] sm:$0xff]
    %452 = vset.pattern.permute.xlu0 0
    %453 = vperm.xlu0 %452, %v447
    %v454 = vpop.permute.xlu0 %453
    %457 = vset.pattern.permute.xlu0 0
    %458 = vperm.xlu0 %457, %v448
    %v459 = vpop.permute.xlu0 %458
    %462 = vset.pattern.permute.xlu0 0
    %463 = vperm.xlu0 %462, %v449
    %v464 = vpop.permute.xlu0 %463
    %467 = vset.pattern.permute.xlu0 0
    %468 = vperm.xlu0 %467, %v450
    %v469 = vpop.permute.xlu0 %468
    %v472 = vsel %vm178, %v443, 0
    %v475 = vsel %vm178, %v444, 0
    %v478 = vsel %vm178, %v445, 0
    %v481 = vsel %vm178, %v446, 0
    %483 = vmatprep.subr.mxu0 0.0
    %484 = vmatpush1.msra.mxu0 %v437
    %485 = vmatprep.subr.mxu0 0.0
    %486 = vmatpush1.msra.mxu0 %v438
    %487 = vmatprep.subr.mxu0 0.0
    %488 = vmatpush1.msra.mxu0 0.0
    %489 = vmatprep.subr.mxu0 0.0
    %490 = vmatpush1.msra.mxu0 0.0
    %491 = vmatprep.subr.mxu0 0.0
    %492 = vmatpush1.msra.mxu0 0.0
    %493 = vmatprep.subr.mxu0 0.0
    %494 = vmatpush1.msra.mxu0 0.0
    %495 = vmatprep.subr.mxu0 0.0
    %496 = vmatpush1.msra.mxu0 0.0
    %497 = vmatprep.subr.mxu0 0.0
    %498 = vmatpush1.msra.mxu0 0.0
    %499 = vmatprep.subr.mxu0 0.0
    %500 = vmatpush1.msra.mxu0 0.0
    %501 = vmatprep.subr.mxu0 0.0
    %502 = vmatpush1.msra.mxu0 0.0
    %503 = vmatprep.subr.mxu0 0.0
    %504 = vmatpush1.msra.mxu0 0.0
    %505 = vmatprep.subr.mxu0 0.0
    %506 = vmatpush1.msra.mxu0 0.0
    %507 = vmatprep.subr.mxu0 0.0
    %508 = vmatpush1.msra.mxu0 0.0
    %509 = vmatprep.subr.mxu0 0.0
    %510 = vmatpush1.msra.mxu0 0.0
    %511 = vmatprep.subr.mxu0 0.0
    %512 = vmatpush1.msra.mxu0 0.0
    %513 = vmatprep.subr.mxu0 0.0
    %514 = vmatpush1.msra.mxu0 0.0
    %515 = vmatprep.subr.mxu0 0.0
    %516 = vmatpush1.msra.mxu0 0.0
    %517 = vmatprep.subr.mxu0 0.0
    %518 = vmatpush1.msra.mxu0 0.0
    %519 = vmatprep.subr.mxu0 0.0
    %520 = vmatpush1.msra.mxu0 0.0
    %521 = vmatprep.subr.mxu0 0.0
    %522 = vmatpush1.msra.mxu0 0.0
    %523 = vmatprep.subr.mxu0 0.0
    %524 = vmatpush1.msra.mxu0 0.0
    %525 = vmatprep.subr.mxu0 0.0
    %526 = vmatpush1.msra.mxu0 0.0
    %527 = vmatprep.subr.mxu0 0.0
    %528 = vmatpush1.msra.mxu0 0.0
    %529 = vmatprep.subr.mxu0 0.0
    %530 = vmatpush1.msra.mxu0 0.0
    %531 = vmatprep.subr.mxu0 0.0
    %532 = vmatpush1.msra.mxu0 0.0
    %533 = vmatprep.subr.mxu0 0.0
    %534 = vmatpush1.msra.mxu0 0.0
    %535 = vmatprep.subr.mxu0 0.0
    %536 = vmatpush1.msra.mxu0 0.0
    %537 = vmatprep.subr.mxu0 0.0
    %538 = vmatpush1.msra.mxu0 0.0
    %539 = vmatprep.subr.mxu0 0.0
    %540 = vmatpush1.msra.mxu0 0.0
    %541 = vmatprep.subr.mxu0 0.0
    %542 = vmatpush1.msra.mxu0 0.0
    %543 = vmatprep.subr.mxu0 0.0
    %544 = vmatpush1.msra.mxu0 0.0
    %545 = vmatprep.subr.mxu0 0.0
    %546 = vmatpush1.msra.mxu0 0.0
    %547 = vmatprep.mubr.f32.mxu0 0.0
    %548 = vmatmul.mubr.f32.gmra.mrb[0].mxu0 %v472
    %v549 = vpop.f32.mrb[0].mxu0
    %v550 = vadd.f32 %v454, %v549
    %v551 = vpop.f32.mrb[0].mxu0
    %552 = vmatprep.mubr.f32.mxu0 0.0
    %553 = vmatmul.mubr.f32.gmra.mrb[0].mxu0 %v475
    %v554 = vpop.f32.mrb[0].mxu0
    %v555 = vadd.f32 %v459, %v554
    %v556 = vpop.f32.mrb[0].mxu0
    %557 = vmatprep.mubr.f32.mxu0 0.0
    %558 = vmatmul.mubr.f32.gmra.mrb[0].mxu0 %v478
    %v559 = vpop.f32.mrb[0].mxu0
    %v560 = vadd.f32 %v464, %v559
    %v561 = vpop.f32.mrb[0].mxu0
    %562 = vmatprep.mubr.f32.mxu0 0.0
    %563 = vmatmul.mubr.f32.gmra.mrb[0].mxu0 %v481
    %v564 = vpop.f32.mrb[0].mxu0
    %v565 = vadd.f32 %v469, %v564
    %v566 = vpop.f32.mrb[0].mxu0
    %567 = vdwg.mxu0
    %v568 = vld [vmem:[%s10] sm:$0xff]
    %v569 = vld [vmem:[%s10 + $0x8] sm:$0xff]
    %v570 = vld [vmem:[%s10 + $0x10] sm:$0xff]
    %v571 = vld [vmem:[%s10 + $0x18] sm:$0xff]
    %v572 = vld [vmem:[%s10 + $0x20] sm:$0xff]
    %v573 = vld [vmem:[%s10 + $0x28] sm:$0xff]
    %v574 = vld [vmem:[%s10 + $0x30] sm:$0xff]
    %v575 = vld [vmem:[%s10 + $0x38] sm:$0xff]
    %v576 = vld [vmem:[%s11] sm:$0xff]
    %v577 = vld [vmem:[%s11 + $0x8] sm:$0xff]
    %v578 = vld [vmem:[%s11 + $0x10] sm:$0xff]
    %v579 = vld [vmem:[%s11 + $0x18] sm:$0xff]
    %v580 = vld [vmem:[%s11 + $0x20] sm:$0xff]
    %v581 = vld [vmem:[%s11 + $0x28] sm:$0xff]
    %v582 = vld [vmem:[%s11 + $0x30] sm:$0xff]
    %v583 = vld [vmem:[%s11 + $0x38] sm:$0xff]
    %585 = vset.pattern.permute.xlu0 0
    %586 = vperm.xlu0 %585, %v576
    %v587 = vpop.permute.xlu0 %586
    %590 = vset.pattern.permute.xlu0 0
    %591 = vperm.xlu0 %590, %v577
    %v592 = vpop.permute.xlu0 %591
    %595 = vset.pattern.permute.xlu0 0
    %596 = vperm.xlu0 %595, %v578
    %v597 = vpop.permute.xlu0 %596
    %600 = vset.pattern.permute.xlu0 0
    %601 = vperm.xlu0 %600, %v579
    %v602 = vpop.permute.xlu0 %601
    %605 = vset.pattern.permute.xlu0 0
    %606 = vperm.xlu0 %605, %v580
    %v607 = vpop.permute.xlu0 %606
    %610 = vset.pattern.permute.xlu0 0
    %611 = vperm.xlu0 %610, %v581
    %v612 = vpop.permute.xlu0 %611
    %615 = vset.pattern.permute.xlu0 0
    %616 = vperm.xlu0 %615, %v582
    %v617 = vpop.permute.xlu0 %616
    %620 = vset.pattern.permute.xlu0 0
    %621 = vperm.xlu0 %620, %v583
    %v622 = vpop.permute.xlu0 %621
    %vm624 = vcmask 261120
    %v626 = vsel %vm624, %v568, 0
    %v629 = vsel %vm624, %v569, 0
    %v632 = vsel %vm624, %v570, 0
    %v635 = vsel %vm624, %v571, 0
    %v638 = vsel %vm624, %v572, 0
    %v641 = vsel %vm624, %v573, 0
    %v644 = vsel %vm624, %v574, 0
    %v647 = vsel %vm624, %v575, 0
    %649 = vmatprep.subr.mxu0 0.0
    %650 = vmatpush1.msra.mxu0 %v439
    %651 = vmatprep.subr.mxu0 0.0
    %652 = vmatpush1.msra.mxu0 %v440
    %653 = vmatprep.subr.mxu0 0.0
    %654 = vmatpush1.msra.mxu0 %v441
    %655 = vmatprep.subr.mxu0 0.0
    %656 = vmatpush1.msra.mxu0 %v442
    %657 = vmatprep.subr.mxu0 0.0
    %658 = vmatpush1.msra.mxu0 0.0
    %659 = vmatprep.subr.mxu0 0.0
    %660 = vmatpush1.msra.mxu0 0.0
    %661 = vmatprep.subr.mxu0 0.0
    %662 = vmatpush1.msra.mxu0 0.0
    %663 = vmatprep.subr.mxu0 0.0
    %664 = vmatpush1.msra.mxu0 0.0
    %665 = vmatprep.subr.mxu0 0.0
    %666 = vmatpush1.msra.mxu0 0.0
    %667 = vmatprep.subr.mxu0 0.0
    %668 = vmatpush1.msra.mxu0 0.0
    %669 = vmatprep.subr.mxu0 0.0
    %670 = vmatpush1.msra.mxu0 0.0
    %671 = vmatprep.subr.mxu0 0.0
    %672 = vmatpush1.msra.mxu0 0.0
    %673 = vmatprep.subr.mxu0 0.0
    %674 = vmatpush1.msra.mxu0 0.0
    %675 = vmatprep.subr.mxu0 0.0
    %676 = vmatpush1.msra.mxu0 0.0
    %677 = vmatprep.subr.mxu0 0.0
    %678 = vmatpush1.msra.mxu0 0.0
    %679 = vmatprep.subr.mxu0 0.0
    %680 = vmatpush1.msra.mxu0 0.0
    %681 = vmatprep.subr.mxu0 0.0
    %682 = vmatpush1.msra.mxu0 0.0
    %683 = vmatprep.subr.mxu0 0.0
    %684 = vmatpush1.msra.mxu0 0.0
    %685 = vmatprep.subr.mxu0 0.0
    %686 = vmatpush1.msra.mxu0 0.0
    %687 = vmatprep.subr.mxu0 0.0
    %688 = vmatpush1.msra.mxu0 0.0
    %689 = vmatprep.subr.mxu0 0.0
    %690 = vmatpush1.msra.mxu0 0.0
    %691 = vmatprep.subr.mxu0 0.0
    %692 = vmatpush1.msra.mxu0 0.0
    %693 = vmatprep.subr.mxu0 0.0
    %694 = vmatpush1.msra.mxu0 0.0
    %695 = vmatprep.subr.mxu0 0.0
    %696 = vmatpush1.msra.mxu0 0.0
    %697 = vmatprep.subr.mxu0 0.0
    %698 = vmatpush1.msra.mxu0 0.0
    %699 = vmatprep.subr.mxu0 0.0
    %700 = vmatpush1.msra.mxu0 0.0
    %701 = vmatprep.subr.mxu0 0.0
    %702 = vmatpush1.msra.mxu0 0.0
    %703 = vmatprep.subr.mxu0 0.0
    %704 = vmatpush1.msra.mxu0 0.0
    %705 = vmatprep.subr.mxu0 0.0
    %706 = vmatpush1.msra.mxu0 0.0
    %707 = vmatprep.subr.mxu0 0.0
    %708 = vmatpush1.msra.mxu0 0.0
    %709 = vmatprep.subr.mxu0 0.0
    %710 = vmatpush1.msra.mxu0 0.0
    %711 = vmatprep.subr.mxu0 0.0
    %712 = vmatpush1.msra.mxu0 0.0
    %713 = vmatprep.mubr.f32.mxu0 0.0
    %714 = vmatmul.mubr.f32.gmra.mrb[0].mxu0 %v626
    %v715 = vpop.f32.mrb[0].mxu0
    %v716 = vadd.f32 %v587, %v715
    %v717 = vpop.f32.mrb[0].mxu0
    %718 = vmatprep.mubr.f32.mxu0 0.0
    %719 = vmatmul.mubr.f32.gmra.mrb[0].mxu0 %v629
    %v720 = vpop.f32.mrb[0].mxu0
    %v721 = vadd.f32 %v592, %v720
    %v722 = vpop.f32.mrb[0].mxu0
    %723 = vmatprep.mubr.f32.mxu0 0.0
    %724 = vmatmul.mubr.f32.gmra.mrb[0].mxu0 %v632
    %v725 = vpop.f32.mrb[0].mxu0
    %v726 = vadd.f32 %v597, %v725
    %v727 = vpop.f32.mrb[0].mxu0
    %728 = vmatprep.mubr.f32.mxu0 0.0
    %729 = vmatmul.mubr.f32.gmra.mrb[0].mxu0 %v635
    %v730 = vpop.f32.mrb[0].mxu0
    %v731 = vadd.f32 %v602, %v730
    %v732 = vpop.f32.mrb[0].mxu0
    %733 = vmatprep.mubr.f32.mxu0 0.0
    %734 = vmatmul.mubr.f32.gmra.mrb[0].mxu0 %v638
    %v735 = vpop.f32.mrb[0].mxu0
    %v736 = vadd.f32 %v607, %v735
    %v737 = vpop.f32.mrb[0].mxu0
    %738 = vmatprep.mubr.f32.mxu0 0.0
    %739 = vmatmul.mubr.f32.gmra.mrb[0].mxu0 %v641
    %v740 = vpop.f32.mrb[0].mxu0
    %v741 = vadd.f32 %v612, %v740
    %v742 = vpop.f32.mrb[0].mxu0
    %743 = vmatprep.mubr.f32.mxu0 0.0
    %744 = vmatmul.mubr.f32.gmra.mrb[0].mxu0 %v644
    %v745 = vpop.f32.mrb[0].mxu0
    %v746 = vadd.f32 %v617, %v745
    %v747 = vpop.f32.mrb[0].mxu0
    %748 = vmatprep.mubr.f32.mxu0 0.0
    %749 = vmatmul.mubr.f32.gmra.mrb[0].mxu0 %v647
    %v750 = vpop.f32.mrb[0].mxu0
    %v751 = vadd.f32 %v622, %v750
    %v752 = vpop.f32.mrb[0].mxu0
    %753 = vdwg.mxu0
    %v754 = vmul.f32 %v258, %v550
    %v755 = vmul.f32 %v263, %v555
    %v756 = vmul.f32 %v268, %v560
    %v757 = vmul.f32 %v273, %v565
    %v758 = vadd.f32 %v754, %v755
    %v759 = vadd.f32 %v758, %v756
    %v760 = vadd.f32 %v759, %v757
    %v761 = vrot.slane %v760, 4
    %v762 = vadd.f32 %v760, %v761
    %v763 = vrot.slane %v762, 2
    %v764 = vadd.f32 %v762, %v763
    %v765 = vrot.slane %v764, 1
    %v766 = vadd.f32 %v764, %v765
    %s767 = scalar_lea.vmem %s1, 24
    %v768 = vld [vmem:[%s767] sm:$0xff]
    %v769 = vld [vmem:[%s767 + $0x8] sm:$0xff]
    %v770 = vld [vmem:[%s767 + $0x10] sm:$0x3f]
    %v772 = vsel %vm69, %v770, 0
    %774 = vmatprep.subr.mxu0 0.0
    %775 = vmatpush1.msra.mxu0 %v768
    %776 = vmatprep.subr.mxu0 0.0
    %777 = vmatpush1.msra.mxu0 %v769
    %778 = vmatprep.subr.mxu0 0.0
    %779 = vmatpush1.msra.mxu0 %v772
    %780 = vmatprep.subr.mxu0 0.0
    %781 = vmatpush1.msra.mxu0 0.0
    %782 = vmatprep.subr.mxu0 0.0
    %783 = vmatpush1.msra.mxu0 0.0
    %784 = vmatprep.subr.mxu0 0.0
    %785 = vmatpush1.msra.mxu0 0.0
    %786 = vmatprep.subr.mxu0 0.0
    %787 = vmatpush1.msra.mxu0 0.0
    %788 = vmatprep.subr.mxu0 0.0
    %789 = vmatpush1.msra.mxu0 0.0
    %790 = vmatprep.subr.mxu0 0.0
    %791 = vmatpush1.msra.mxu0 0.0
    %792 = vmatprep.subr.mxu0 0.0
    %793 = vmatpush1.msra.mxu0 0.0
    %794 = vmatprep.subr.mxu0 0.0
    %795 = vmatpush1.msra.mxu0 0.0
    %796 = vmatprep.subr.mxu0 0.0
    %797 = vmatpush1.msra.mxu0 0.0
    %798 = vmatprep.subr.mxu0 0.0
    %799 = vmatpush1.msra.mxu0 0.0
    %800 = vmatprep.subr.mxu0 0.0
    %801 = vmatpush1.msra.mxu0 0.0
    %802 = vmatprep.subr.mxu0 0.0
    %803 = vmatpush1.msra.mxu0 0.0
    %804 = vmatprep.subr.mxu0 0.0
    %805 = vmatpush1.msra.mxu0 0.0
    %806 = vmatprep.subr.mxu0 0.0
    %807 = vmatpush1.msra.mxu0 0.0
    %808 = vmatprep.subr.mxu0 0.0
    %809 = vmatpush1.msra.mxu0 0.0
    %810 = vmatprep.subr.mxu0 0.0
    %811 = vmatpush1.msra.mxu0 0.0
    %812 = vmatprep.subr.mxu0 0.0
    %813 = vmatpush1.msra.mxu0 0.0
    %814 = vmatprep.subr.mxu0 0.0
    %815 = vmatpush1.msra.mxu0 0.0
    %816 = vmatprep.subr.mxu0 0.0
    %817 = vmatpush1.msra.mxu0 0.0
    %818 = vmatprep.subr.mxu0 0.0
    %819 = vmatpush1.msra.mxu0 0.0
    %820 = vmatprep.subr.mxu0 0.0
    %821 = vmatpush1.msra.mxu0 0.0
    %822 = vmatprep.subr.mxu0 0.0
    %823 = vmatpush1.msra.mxu0 0.0
    %824 = vmatprep.subr.mxu0 0.0
    %825 = vmatpush1.msra.mxu0 0.0
    %826 = vmatprep.subr.mxu0 0.0
    %827 = vmatpush1.msra.mxu0 0.0
    %828 = vmatprep.subr.mxu0 0.0
    %829 = vmatpush1.msra.mxu0 0.0
    %830 = vmatprep.subr.mxu0 0.0
    %831 = vmatpush1.msra.mxu0 0.0
    %832 = vmatprep.subr.mxu0 0.0
    %833 = vmatpush1.msra.mxu0 0.0
    %834 = vmatprep.subr.mxu0 0.0
    %835 = vmatpush1.msra.mxu0 0.0
    %836 = vmatprep.subr.mxu0 0.0
    %837 = vmatpush1.msra.mxu0 0.0
    %838 = vmatprep.mubr.f32.mxu0 0.0
    %839 = vmatmul.mubr.f32.gmra.mrb[0].mxu0 %v322
    %v840 = vpop.f32.mrb[0].mxu0
    %v841 = vadd.f32 %v294, %v840
    %v842 = vpop.f32.mrb[0].mxu0
    %843 = vmatprep.mubr.f32.mxu0 0.0
    %844 = vmatmul.mubr.f32.gmra.mrb[0].mxu0 %v325
    %v845 = vpop.f32.mrb[0].mxu0
    %v846 = vadd.f32 %v299, %v845
    %v847 = vpop.f32.mrb[0].mxu0
    %848 = vmatprep.mubr.f32.mxu0 0.0
    %849 = vmatmul.mubr.f32.gmra.mrb[0].mxu0 %v328
    %v850 = vpop.f32.mrb[0].mxu0
    %v851 = vadd.f32 %v304, %v850
    %v852 = vpop.f32.mrb[0].mxu0
    %853 = vmatprep.mubr.f32.mxu0 0.0
    %854 = vmatmul.mubr.f32.gmra.mrb[0].mxu0 %v331
    %v855 = vpop.f32.mrb[0].mxu0
    %v856 = vadd.f32 %v309, %v855
    %v857 = vpop.f32.mrb[0].mxu0
    %858 = vmatprep.mubr.f32.mxu0 0.0
    %859 = vmatmul.mubr.f32.gmra.mrb[0].mxu0 %v334
    %v860 = vpop.f32.mrb[0].mxu0
    %v861 = vadd.f32 %v314, %v860
    %v862 = vpop.f32.mrb[0].mxu0
    %863 = vmatprep.mubr.f32.mxu0 0.0
    %864 = vmatmul.mubr.f32.gmra.mrb[0].mxu0 %v337
    %v865 = vpop.f32.mrb[0].mxu0
    %v866 = vadd.f32 %v319, %v865
    %v867 = vpop.f32.mrb[0].mxu0
    %868 = vdwg.mxu0
    %v869 = vmax.f32 %v841, 0.0
    %v870 = vmax.f32 %v846, 0.0
    %v871 = vmax.f32 %v851, 0.0
    %v872 = vmax.f32 %v856, 0.0
    %v873 = vmax.f32 %v861, 0.0
    %v874 = vmax.f32 %v866, 0.0
    %875 = vmatprep.subr.mxu0 0.0
    %876 = vmatpush1.msra.mxu0 %v869
    %877 = vmatprep.subr.mxu0 0.0
    %878 = vmatpush1.msra.mxu0 %v870
    %879 = vmatprep.subr.mxu0 0.0
    %880 = vmatpush1.msra.mxu0 0.0
    %881 = vmatprep.subr.mxu0 0.0
    %882 = vmatpush1.msra.mxu0 0.0
    %883 = vmatprep.subr.mxu0 0.0
    %884 = vmatpush1.msra.mxu0 0.0
    %885 = vmatprep.subr.mxu0 0.0
    %886 = vmatpush1.msra.mxu0 0.0
    %887 = vmatprep.subr.mxu0 0.0
    %888 = vmatpush1.msra.mxu0 0.0
    %889 = vmatprep.subr.mxu0 0.0
    %890 = vmatpush1.msra.mxu0 0.0
    %891 = vmatprep.subr.mxu0 0.0
    %892 = vmatpush1.msra.mxu0 0.0
    %893 = vmatprep.subr.mxu0 0.0
    %894 = vmatpush1.msra.mxu0 0.0
    %895 = vmatprep.subr.mxu0 0.0
    %896 = vmatpush1.msra.mxu0 0.0
    %897 = vmatprep.subr.mxu0 0.0
    %898 = vmatpush1.msra.mxu0 0.0
    %899 = vmatprep.subr.mxu0 0.0
    %900 = vmatpush1.msra.mxu0 0.0
    %901 = vmatprep.subr.mxu0 0.0
    %902 = vmatpush1.msra.mxu0 0.0
    %903 = vmatprep.subr.mxu0 0.0
    %904 = vmatpush1.msra.mxu0 0.0
    %905 = vmatprep.subr.mxu0 0.0
    %906 = vmatpush1.msra.mxu0 0.0
    %907 = vmatprep.subr.mxu0 0.0
    %908 = vmatpush1.msra.mxu0 0.0
    %909 = vmatprep.subr.mxu0 0.0
    %910 = vmatpush1.msra.mxu0 0.0
    %911 = vmatprep.subr.mxu0 0.0
    %912 = vmatpush1.msra.mxu0 0.0
    %913 = vmatprep.subr.mxu0 0.0
    %914 = vmatpush1.msra.mxu0 0.0
    %915 = vmatprep.subr.mxu0 0.0
    %916 = vmatpush1.msra.mxu0 0.0
    %917 = vmatprep.subr.mxu0 0.0
    %918 = vmatpush1.msra.mxu0 0.0
    %919 = vmatprep.subr.mxu0 0.0
    %920 = vmatpush1.msra.mxu0 0.0
    %921 = vmatprep.subr.mxu0 0.0
    %922 = vmatpush1.msra.mxu0 0.0
    %923 = vmatprep.subr.mxu0 0.0
    %924 = vmatpush1.msra.mxu0 0.0
    %925 = vmatprep.subr.mxu0 0.0
    %926 = vmatpush1.msra.mxu0 0.0
    %927 = vmatprep.subr.mxu0 0.0
    %928 = vmatpush1.msra.mxu0 0.0
    %929 = vmatprep.subr.mxu0 0.0
    %930 = vmatpush1.msra.mxu0 0.0
    %931 = vmatprep.subr.mxu0 0.0
    %932 = vmatpush1.msra.mxu0 0.0
    %933 = vmatprep.subr.mxu0 0.0
    %934 = vmatpush1.msra.mxu0 0.0
    %935 = vmatprep.subr.mxu0 0.0
    %936 = vmatpush1.msra.mxu0 0.0
    %937 = vmatprep.subr.mxu0 0.0
    %938 = vmatpush1.msra.mxu0 0.0
    %939 = vmatprep.mubr.f32.mxu0 0.0
    %940 = vmatmul.mubr.f32.gmra.mrb[0].mxu0 %v472
    %v941 = vpop.f32.mrb[0].mxu0
    %v942 = vadd.f32 %v454, %v941
    %v943 = vpop.f32.mrb[0].mxu0
    %944 = vmatprep.mubr.f32.mxu0 0.0
    %945 = vmatmul.mubr.f32.gmra.mrb[0].mxu0 %v475
    %v946 = vpop.f32.mrb[0].mxu0
    %v947 = vadd.f32 %v459, %v946
    %v948 = vpop.f32.mrb[0].mxu0
    %949 = vmatprep.mubr.f32.mxu0 0.0
    %950 = vmatmul.mubr.f32.gmra.mrb[0].mxu0 %v478
    %v951 = vpop.f32.mrb[0].mxu0
    %v952 = vadd.f32 %v464, %v951
    %v953 = vpop.f32.mrb[0].mxu0
    %954 = vmatprep.mubr.f32.mxu0 0.0
    %955 = vmatmul.mubr.f32.gmra.mrb[0].mxu0 %v481
    %v956 = vpop.f32.mrb[0].mxu0
    %v957 = vadd.f32 %v469, %v956
    %v958 = vpop.f32.mrb[0].mxu0
    %959 = vdwg.mxu0
    %960 = vmatprep.subr.mxu0 0.0
    %961 = vmatpush1.msra.mxu0 %v871
    %962 = vmatprep.subr.mxu0 0.0
    %963 = vmatpush1.msra.mxu0 %v872
    %964 = vmatprep.subr.mxu0 0.0
    %965 = vmatpush1.msra.mxu0 %v873
    %966 = vmatprep.subr.mxu0 0.0
    %967 = vmatpush1.msra.mxu0 %v874
    %968 = vmatprep.subr.mxu0 0.0
    %969 = vmatpush1.msra.mxu0 0.0
    %970 = vmatprep.subr.mxu0 0.0
    %971 = vmatpush1.msra.mxu0 0.0
    %972 = vmatprep.subr.mxu0 0.0
    %973 = vmatpush1.msra.mxu0 0.0
    %974 = vmatprep.subr.mxu0 0.0
    %975 = vmatpush1.msra.mxu0 0.0
    %976 = vmatprep.subr.mxu0 0.0
    %977 = vmatpush1.msra.mxu0 0.0
    %978 = vmatprep.subr.mxu0 0.0
    %979 = vmatpush1.msra.mxu0 0.0
    %980 = vmatprep.subr.mxu0 0.0
    %981 = vmatpush1.msra.mxu0 0.0
    %982 = vmatprep.subr.mxu0 0.0
    %983 = vmatpush1.msra.mxu0 0.0
    %984 = vmatprep.subr.mxu0 0.0
    %985 = vmatpush1.msra.mxu0 0.0
    %986 = vmatprep.subr.mxu0 0.0
    %987 = vmatpush1.msra.mxu0 0.0
    %988 = vmatprep.subr.mxu0 0.0
    %989 = vmatpush1.msra.mxu0 0.0
    %990 = vmatprep.subr.mxu0 0.0
    %991 = vmatpush1.msra.mxu0 0.0
    %992 = vmatprep.subr.mxu0 0.0
    %993 = vmatpush1.msra.mxu0 0.0
    %994 = vmatprep.subr.mxu0 0.0
    %995 = vmatpush1.msra.mxu0 0.0
    %996 = vmatprep.subr.mxu0 0.0
    %997 = vmatpush1.msra.mxu0 0.0
    %998 = vmatprep.subr.mxu0 0.0
    %999 = vmatpush1.msra.mxu0 0.0
    %1000 = vmatprep.subr.mxu0 0.0
    %1001 = vmatpush1.msra.mxu0 0.0
    %1002 = vmatprep.subr.mxu0 0.0
    %1003 = vmatpush1.msra.mxu0 0.0
    %1004 = vmatprep.subr.mxu0 0.0
    %1005 = vmatpush1.msra.mxu0 0.0
    %1006 = vmatprep.subr.mxu0 0.0
    %1007 = vmatpush1.msra.mxu0 0.0
    %1008 = vmatprep.subr.mxu0 0.0
    %1009 = vmatpush1.msra.mxu0 0.0
    %1010 = vmatprep.subr.mxu0 0.0
    %1011 = vmatpush1.msra.mxu0 0.0
    %1012 = vmatprep.subr.mxu0 0.0
    %1013 = vmatpush1.msra.mxu0 0.0
    %1014 = vmatprep.subr.mxu0 0.0
    %1015 = vmatpush1.msra.mxu0 0.0
    %1016 = vmatprep.subr.mxu0 0.0
    %1017 = vmatpush1.msra.mxu0 0.0
    %1018 = vmatprep.subr.mxu0 0.0
    %1019 = vmatpush1.msra.mxu0 0.0
    %1020 = vmatprep.subr.mxu0 0.0
    %1021 = vmatpush1.msra.mxu0 0.0
    %1022 = vmatprep.subr.mxu0 0.0
    %1023 = vmatpush1.msra.mxu0 0.0
    %1024 = vmatprep.mubr.f32.mxu0 0.0
    %1025 = vmatmul.mubr.f32.gmra.mrb[0].mxu0 %v626
    %v1026 = vpop.f32.mrb[0].mxu0
    %v1027 = vadd.f32 %v587, %v1026
    %v1028 = vpop.f32.mrb[0].mxu0
    %1029 = vmatprep.mubr.f32.mxu0 0.0
    %1030 = vmatmul.mubr.f32.gmra.mrb[0].mxu0 %v629
    %v1031 = vpop.f32.mrb[0].mxu0
    %v1032 = vadd.f32 %v592, %v1031
    %v1033 = vpop.f32.mrb[0].mxu0
    %1034 = vmatprep.mubr.f32.mxu0 0.0
    %1035 = vmatmul.mubr.f32.gmra.mrb[0].mxu0 %v632
    %v1036 = vpop.f32.mrb[0].mxu0
    %v1037 = vadd.f32 %v597, %v1036
    %v1038 = vpop.f32.mrb[0].mxu0
    %1039 = vmatprep.mubr.f32.mxu0 0.0
    %1040 = vmatmul.mubr.f32.gmra.mrb[0].mxu0 %v635
    %v1041 = vpop.f32.mrb[0].mxu0
    %v1042 = vadd.f32 %v602, %v1041
    %v1043 = vpop.f32.mrb[0].mxu0
    %1044 = vmatprep.mubr.f32.mxu0 0.0
    %1045 = vmatmul.mubr.f32.gmra.mrb[0].mxu0 %v638
    %v1046 = vpop.f32.mrb[0].mxu0
    %v1047 = vadd.f32 %v607, %v1046
    %v1048 = vpop.f32.mrb[0].mxu0
    %1049 = vmatprep.mubr.f32.mxu0 0.0
    %1050 = vmatmul.mubr.f32.gmra.mrb[0].mxu0 %v641
    %v1051 = vpop.f32.mrb[0].mxu0
    %v1052 = vadd.f32 %v612, %v1051
    %v1053 = vpop.f32.mrb[0].mxu0
    %1054 = vmatprep.mubr.f32.mxu0 0.0
    %1055 = vmatmul.mubr.f32.gmra.mrb[0].mxu0 %v644
    %v1056 = vpop.f32.mrb[0].mxu0
    %v1057 = vadd.f32 %v617, %v1056
    %v1058 = vpop.f32.mrb[0].mxu0
    %1059 = vmatprep.mubr.f32.mxu0 0.0
    %1060 = vmatmul.mubr.f32.gmra.mrb[0].mxu0 %v647
    %v1061 = vpop.f32.mrb[0].mxu0
    %v1062 = vadd.f32 %v622, %v1061
    %v1063 = vpop.f32.mrb[0].mxu0
    %1064 = vdwg.mxu0
    %v1065 = vmul.f32 %v258, %v942
    %v1066 = vmul.f32 %v263, %v947
    %v1067 = vmul.f32 %v268, %v952
    %v1068 = vmul.f32 %v273, %v957
    %v1069 = vadd.f32 %v1065, %v1066
    %v1070 = vadd.f32 %v1069, %v1067
    %v1071 = vadd.f32 %v1070, %v1068
    %v1072 = vrot.slane %v1071, 4
    %v1073 = vadd.f32 %v1071, %v1072
    %v1074 = vrot.slane %v1073, 2
    %v1075 = vadd.f32 %v1073, %v1074
    %v1076 = vrot.slane %v1075, 1
    %v1077 = vadd.f32 %v1075, %v1076
    %s1078 = scalar_lea.vmem %s1, 48
    %v1079 = vld [vmem:[%s1078] sm:$0xff]
    %v1080 = vld [vmem:[%s1078 + $0x8] sm:$0xff]
    %v1081 = vld [vmem:[%s1078 + $0x10] sm:$0x3f]
    %v1083 = vsel %vm69, %v1081, 0
    %1085 = vmatprep.subr.mxu0 0.0
    %1086 = vmatpush1.msra.mxu0 %v1079
    %1087 = vmatprep.subr.mxu0 0.0
    %1088 = vmatpush1.msra.mxu0 %v1080
    %1089 = vmatprep.subr.mxu0 0.0
    %1090 = vmatpush1.msra.mxu0 %v1083
    %1091 = vmatprep.subr.mxu0 0.0
    %1092 = vmatpush1.msra.mxu0 0.0
    %1093 = vmatprep.subr.mxu0 0.0
    %1094 = vmatpush1.msra.mxu0 0.0
    %1095 = vmatprep.subr.mxu0 0.0
    %1096 = vmatpush1.msra.mxu0 0.0
    %1097 = vmatprep.subr.mxu0 0.0
    %1098 = vmatpush1.msra.mxu0 0.0
    %1099 = vmatprep.subr.mxu0 0.0
    %1100 = vmatpush1.msra.mxu0 0.0
    %1101 = vmatprep.subr.mxu0 0.0
    %1102 = vmatpush1.msra.mxu0 0.0
    %1103 = vmatprep.subr.mxu0 0.0
    %1104 = vmatpush1.msra.mxu0 0.0
    %1105 = vmatprep.subr.mxu0 0.0
    %1106 = vmatpush1.msra.mxu0 0.0
    %1107 = vmatprep.subr.mxu0 0.0
    %1108 = vmatpush1.msra.mxu0 0.0
    %1109 = vmatprep.subr.mxu0 0.0
    %1110 = vmatpush1.msra.mxu0 0.0
    %1111 = vmatprep.subr.mxu0 0.0
    %1112 = vmatpush1.msra.mxu0 0.0
    %1113 = vmatprep.subr.mxu0 0.0
    %1114 = vmatpush1.msra.mxu0 0.0
    %1115 = vmatprep.subr.mxu0 0.0
    %1116 = vmatpush1.msra.mxu0 0.0
    %1117 = vmatprep.subr.mxu0 0.0
    %1118 = vmatpush1.msra.mxu0 0.0
    %1119 = vmatprep.subr.mxu0 0.0
    %1120 = vmatpush1.msra.mxu0 0.0
    %1121 = vmatprep.subr.mxu0 0.0
    %1122 = vmatpush1.msra.mxu0 0.0
    %1123 = vmatprep.subr.mxu0 0.0
    %1124 = vmatpush1.msra.mxu0 0.0
    %1125 = vmatprep.subr.mxu0 0.0
    %1126 = vmatpush1.msra.mxu0 0.0
    %1127 = vmatprep.subr.mxu0 0.0
    %1128 = vmatpush1.msra.mxu0 0.0
    %1129 = vmatprep.subr.mxu0 0.0
    %1130 = vmatpush1.msra.mxu0 0.0
    %1131 = vmatprep.subr.mxu0 0.0
    %1132 = vmatpush1.msra.mxu0 0.0
    %1133 = vmatprep.subr.mxu0 0.0
    %1134 = vmatpush1.msra.mxu0 0.0
    %1135 = vmatprep.subr.mxu0 0.0
    %1136 = vmatpush1.msra.mxu0 0.0
    %1137 = vmatprep.subr.mxu0 0.0
    %1138 = vmatpush1.msra.mxu0 0.0
    %1139 = vmatprep.subr.mxu0 0.0
    %1140 = vmatpush1.msra.mxu0 0.0
    %1141 = vmatprep.subr.mxu0 0.0
    %1142 = vmatpush1.msra.mxu0 0.0
    %1143 = vmatprep.subr.mxu0 0.0
    %1144 = vmatpush1.msra.mxu0 0.0
    %1145 = vmatprep.subr.mxu0 0.0
    %1146 = vmatpush1.msra.mxu0 0.0
    %1147 = vmatprep.subr.mxu0 0.0
    %1148 = vmatpush1.msra.mxu0 0.0
    %1149 = vmatprep.mubr.f32.mxu0 0.0
    %1150 = vmatmul.mubr.f32.gmra.mrb[0].mxu0 %v322
    %v1151 = vpop.f32.mrb[0].mxu0
    %v1152 = vadd.f32 %v294, %v1151
    %v1153 = vpop.f32.mrb[0].mxu0
    %1154 = vmatprep.mubr.f32.mxu0 0.0
    %1155 = vmatmul.mubr.f32.gmra.mrb[0].mxu0 %v325
    %v1156 = vpop.f32.mrb[0].mxu0
    %v1157 = vadd.f32 %v299, %v1156
    %v1158 = vpop.f32.mrb[0].mxu0
    %1159 = vmatprep.mubr.f32.mxu0 0.0
    %1160 = vmatmul.mubr.f32.gmra.mrb[0].mxu0 %v328
    %v1161 = vpop.f32.mrb[0].mxu0
    %v1162 = vadd.f32 %v304, %v1161
    %v1163 = vpop.f32.mrb[0].mxu0
    %1164 = vmatprep.mubr.f32.mxu0 0.0
    %1165 = vmatmul.mubr.f32.gmra.mrb[0].mxu0 %v331
    %v1166 = vpop.f32.mrb[0].mxu0
    %v1167 = vadd.f32 %v309, %v1166
    %v1168 = vpop.f32.mrb[0].mxu0
    %1169 = vmatprep.mubr.f32.mxu0 0.0
    %1170 = vmatmul.mubr.f32.gmra.mrb[0].mxu0 %v334
    %v1171 = vpop.f32.mrb[0].mxu0
    %v1172 = vadd.f32 %v314, %v1171
    %v1173 = vpop.f32.mrb[0].mxu0
    %1174 = vmatprep.mubr.f32.mxu0 0.0
    %1175 = vmatmul.mubr.f32.gmra.mrb[0].mxu0 %v337
    %v1176 = vpop.f32.mrb[0].mxu0
    %v1177 = vadd.f32 %v319, %v1176
    %v1178 = vpop.f32.mrb[0].mxu0
    %1179 = vdwg.mxu0
    %v1180 = vmax.f32 %v1152, 0.0
    %v1181 = vmax.f32 %v1157, 0.0
    %v1182 = vmax.f32 %v1162, 0.0
    %v1183 = vmax.f32 %v1167, 0.0
    %v1184 = vmax.f32 %v1172, 0.0
    %v1185 = vmax.f32 %v1177, 0.0
    %1186 = vmatprep.subr.mxu0 0.0
    %1187 = vmatpush1.msra.mxu0 %v1180
    %1188 = vmatprep.subr.mxu0 0.0
    %1189 = vmatpush1.msra.mxu0 %v1181
    %1190 = vmatprep.subr.mxu0 0.0
    %1191 = vmatpush1.msra.mxu0 0.0
    %1192 = vmatprep.subr.mxu0 0.0
    %1193 = vmatpush1.msra.mxu0 0.0
    %1194 = vmatprep.subr.mxu0 0.0
    %1195 = vmatpush1.msra.mxu0 0.0
    %1196 = vmatprep.subr.mxu0 0.0
    %1197 = vmatpush1.msra.mxu0 0.0
    %1198 = vmatprep.subr.mxu0 0.0
    %1199 = vmatpush1.msra.mxu0 0.0
    %1200 = vmatprep.subr.mxu0 0.0
    %1201 = vmatpush1.msra.mxu0 0.0
    %1202 = vmatprep.subr.mxu0 0.0
    %1203 = vmatpush1.msra.mxu0 0.0
    %1204 = vmatprep.subr.mxu0 0.0
    %1205 = vmatpush1.msra.mxu0 0.0
    %1206 = vmatprep.subr.mxu0 0.0
    %1207 = vmatpush1.msra.mxu0 0.0
    %1208 = vmatprep.subr.mxu0 0.0
    %1209 = vmatpush1.msra.mxu0 0.0
    %1210 = vmatprep.subr.mxu0 0.0
    %1211 = vmatpush1.msra.mxu0 0.0
    %1212 = vmatprep.subr.mxu0 0.0
    %1213 = vmatpush1.msra.mxu0 0.0
    %1214 = vmatprep.subr.mxu0 0.0
    %1215 = vmatpush1.msra.mxu0 0.0
    %1216 = vmatprep.subr.mxu0 0.0
    %1217 = vmatpush1.msra.mxu0 0.0
    %1218 = vmatprep.subr.mxu0 0.0
    %1219 = vmatpush1.msra.mxu0 0.0
    %1220 = vmatprep.subr.mxu0 0.0
    %1221 = vmatpush1.msra.mxu0 0.0
    %1222 = vmatprep.subr.mxu0 0.0
    %1223 = vmatpush1.msra.mxu0 0.0
    %1224 = vmatprep.subr.mxu0 0.0
    %1225 = vmatpush1.msra.mxu0 0.0
    %1226 = vmatprep.subr.mxu0 0.0
    %1227 = vmatpush1.msra.mxu0 0.0
    %1228 = vmatprep.subr.mxu0 0.0
    %1229 = vmatpush1.msra.mxu0 0.0
    %1230 = vmatprep.subr.mxu0 0.0
    %1231 = vmatpush1.msra.mxu0 0.0
    %1232 = vmatprep.subr.mxu0 0.0
    %1233 = vmatpush1.msra.mxu0 0.0
    %1234 = vmatprep.subr.mxu0 0.0
    %1235 = vmatpush1.msra.mxu0 0.0
    %1236 = vmatprep.subr.mxu0 0.0
    %1237 = vmatpush1.msra.mxu0 0.0
    %1238 = vmatprep.subr.mxu0 0.0
    %1239 = vmatpush1.msra.mxu0 0.0
    %1240 = vmatprep.subr.mxu0 0.0
    %1241 = vmatpush1.msra.mxu0 0.0
    %1242 = vmatprep.subr.mxu0 0.0
    %1243 = vmatpush1.msra.mxu0 0.0
    %1244 = vmatprep.subr.mxu0 0.0
    %1245 = vmatpush1.msra.mxu0 0.0
    %1246 = vmatprep.subr.mxu0 0.0
    %1247 = vmatpush1.msra.mxu0 0.0
    %1248 = vmatprep.subr.mxu0 0.0
    %1249 = vmatpush1.msra.mxu0 0.0
    %1250 = vmatprep.mubr.f32.mxu0 0.0
    %1251 = vmatmul.mubr.f32.gmra.mrb[0].mxu0 %v472
    %v1252 = vpop.f32.mrb[0].mxu0
    %v1253 = vadd.f32 %v454, %v1252
    %v1254 = vpop.f32.mrb[0].mxu0
    %1255 = vmatprep.mubr.f32.mxu0 0.0
    %1256 = vmatmul.mubr.f32.gmra.mrb[0].mxu0 %v475
    %v1257 = vpop.f32.mrb[0].mxu0
    %v1258 = vadd.f32 %v459, %v1257
    %v1259 = vpop.f32.mrb[0].mxu0
    %1260 = vmatprep.mubr.f32.mxu0 0.0
    %1261 = vmatmul.mubr.f32.gmra.mrb[0].mxu0 %v478
    %v1262 = vpop.f32.mrb[0].mxu0
    %v1263 = vadd.f32 %v464, %v1262
    %v1264 = vpop.f32.mrb[0].mxu0
    %1265 = vmatprep.mubr.f32.mxu0 0.0
    %1266 = vmatmul.mubr.f32.gmra.mrb[0].mxu0 %v481
    %v1267 = vpop.f32.mrb[0].mxu0
    %v1268 = vadd.f32 %v469, %v1267
    %v1269 = vpop.f32.mrb[0].mxu0
    %1270 = vdwg.mxu0
    %1271 = vmatprep.subr.mxu0 0.0
    %1272 = vmatpush1.msra.mxu0 %v1182
    %1273 = vmatprep.subr.mxu0 0.0
    %1274 = vmatpush1.msra.mxu0 %v1183
    %1275 = vmatprep.subr.mxu0 0.0
    %1276 = vmatpush1.msra.mxu0 %v1184
    %1277 = vmatprep.subr.mxu0 0.0
    %1278 = vmatpush1.msra.mxu0 %v1185
    %1279 = vmatprep.subr.mxu0 0.0
    %1280 = vmatpush1.msra.mxu0 0.0
    %1281 = vmatprep.subr.mxu0 0.0
    %1282 = vmatpush1.msra.mxu0 0.0
    %1283 = vmatprep.subr.mxu0 0.0
    %1284 = vmatpush1.msra.mxu0 0.0
    %1285 = vmatprep.subr.mxu0 0.0
    %1286 = vmatpush1.msra.mxu0 0.0
    %1287 = vmatprep.subr.mxu0 0.0
    %1288 = vmatpush1.msra.mxu0 0.0
    %1289 = vmatprep.subr.mxu0 0.0
    %1290 = vmatpush1.msra.mxu0 0.0
    %1291 = vmatprep.subr.mxu0 0.0
    %1292 = vmatpush1.msra.mxu0 0.0
    %1293 = vmatprep.subr.mxu0 0.0
    %1294 = vmatpush1.msra.mxu0 0.0
    %1295 = vmatprep.subr.mxu0 0.0
    %1296 = vmatpush1.msra.mxu0 0.0
    %1297 = vmatprep.subr.mxu0 0.0
    %1298 = vmatpush1.msra.mxu0 0.0
    %1299 = vmatprep.subr.mxu0 0.0
    %1300 = vmatpush1.msra.mxu0 0.0
    %1301 = vmatprep.subr.mxu0 0.0
    %1302 = vmatpush1.msra.mxu0 0.0
    %1303 = vmatprep.subr.mxu0 0.0
    %1304 = vmatpush1.msra.mxu0 0.0
    %1305 = vmatprep.subr.mxu0 0.0
    %1306 = vmatpush1.msra.mxu0 0.0
    %1307 = vmatprep.subr.mxu0 0.0
    %1308 = vmatpush1.msra.mxu0 0.0
    %1309 = vmatprep.subr.mxu0 0.0
    %1310 = vmatpush1.msra.mxu0 0.0
    %1311 = vmatprep.subr.mxu0 0.0
    %1312 = vmatpush1.msra.mxu0 0.0
    %1313 = vmatprep.subr.mxu0 0.0
    %1314 = vmatpush1.msra.mxu0 0.0
    %1315 = vmatprep.subr.mxu0 0.0
    %1316 = vmatpush1.msra.mxu0 0.0
    %1317 = vmatprep.subr.mxu0 0.0
    %1318 = vmatpush1.msra.mxu0 0.0
    %1319 = vmatprep.subr.mxu0 0.0
    %1320 = vmatpush1.msra.mxu0 0.0
    %1321 = vmatprep.subr.mxu0 0.0
    %1322 = vmatpush1.msra.mxu0 0.0
    %1323 = vmatprep.subr.mxu0 0.0
    %1324 = vmatpush1.msra.mxu0 0.0
    %1325 = vmatprep.subr.mxu0 0.0
    %1326 = vmatpush1.msra.mxu0 0.0
    %1327 = vmatprep.subr.mxu0 0.0
    %1328 = vmatpush1.msra.mxu0 0.0
    %1329 = vmatprep.subr.mxu0 0.0
    %1330 = vmatpush1.msra.mxu0 0.0
    %1331 = vmatprep.subr.mxu0 0.0
    %1332 = vmatpush1.msra.mxu0 0.0
    %1333 = vmatprep.subr.mxu0 0.0
    %1334 = vmatpush1.msra.mxu0 0.0
    %1335 = vmatprep.mubr.f32.mxu0 0.0
    %1336 = vmatmul.mubr.f32.gmra.mrb[0].mxu0 %v626
    %v1337 = vpop.f32.mrb[0].mxu0
    %v1338 = vadd.f32 %v587, %v1337
    %v1339 = vpop.f32.mrb[0].mxu0
    %1340 = vmatprep.mubr.f32.mxu0 0.0
    %1341 = vmatmul.mubr.f32.gmra.mrb[0].mxu0 %v629
    %v1342 = vpop.f32.mrb[0].mxu0
    %v1343 = vadd.f32 %v592, %v1342
    %v1344 = vpop.f32.mrb[0].mxu0
    %1345 = vmatprep.mubr.f32.mxu0 0.0
    %1346 = vmatmul.mubr.f32.gmra.mrb[0].mxu0 %v632
    %v1347 = vpop.f32.mrb[0].mxu0
    %v1348 = vadd.f32 %v597, %v1347
    %v1349 = vpop.f32.mrb[0].mxu0
    %1350 = vmatprep.mubr.f32.mxu0 0.0
    %1351 = vmatmul.mubr.f32.gmra.mrb[0].mxu0 %v635
    %v1352 = vpop.f32.mrb[0].mxu0
    %v1353 = vadd.f32 %v602, %v1352
    %v1354 = vpop.f32.mrb[0].mxu0
    %1355 = vmatprep.mubr.f32.mxu0 0.0
    %1356 = vmatmul.mubr.f32.gmra.mrb[0].mxu0 %v638
    %v1357 = vpop.f32.mrb[0].mxu0
    %v1358 = vadd.f32 %v607, %v1357
    %v1359 = vpop.f32.mrb[0].mxu0
    %1360 = vmatprep.mubr.f32.mxu0 0.0
    %1361 = vmatmul.mubr.f32.gmra.mrb[0].mxu0 %v641
    %v1362 = vpop.f32.mrb[0].mxu0
    %v1363 = vadd.f32 %v612, %v1362
    %v1364 = vpop.f32.mrb[0].mxu0
    %1365 = vmatprep.mubr.f32.mxu0 0.0
    %1366 = vmatmul.mubr.f32.gmra.mrb[0].mxu0 %v644
    %v1367 = vpop.f32.mrb[0].mxu0
    %v1368 = vadd.f32 %v617, %v1367
    %v1369 = vpop.f32.mrb[0].mxu0
    %1370 = vmatprep.mubr.f32.mxu0 0.0
    %1371 = vmatmul.mubr.f32.gmra.mrb[0].mxu0 %v647
    %v1372 = vpop.f32.mrb[0].mxu0
    %v1373 = vadd.f32 %v622, %v1372
    %v1374 = vpop.f32.mrb[0].mxu0
    %1375 = vdwg.mxu0
    %v1376 = vmul.f32 %v258, %v1253
    %v1377 = vmul.f32 %v263, %v1258
    %v1378 = vmul.f32 %v268, %v1263
    %v1379 = vmul.f32 %v273, %v1268
    %v1380 = vadd.f32 %v1376, %v1377
    %v1381 = vadd.f32 %v1380, %v1378
    %v1382 = vadd.f32 %v1381, %v1379
    %v1383 = vrot.slane %v1382, 4
    %v1384 = vadd.f32 %v1382, %v1383
    %v1385 = vrot.slane %v1384, 2
    %v1386 = vadd.f32 %v1384, %v1385
    %v1387 = vrot.slane %v1386, 1
    %v1388 = vadd.f32 %v1386, %v1387
    %v1389 = vmax.f32 %v766, %v1077
    %v1390 = vmax.f32 %v1389, %v1388
    %v1391 = vsub.f32 %v766, %v1390
    %v1392 = vmul.f32 %v1391, 1.442695
    %v1393 = vpow.pop %v1392
    %v1394 = vsub.f32 %v1077, %v1390
    %v1395 = vmul.f32 %v1394, 1.442695
    %v1396 = vpow.pop %v1395
    %v1397 = vsub.f32 %v1388, %v1390
    %v1398 = vmul.f32 %v1397, 1.442695
    %v1399 = vpow.pop %v1398
    %v1400 = vadd.f32 %v1393, %v1396
    %v1401 = vadd.f32 %v1400, %v1399
    %v1402 = vrcp.pop %v1401
    %v1403 = vmul.f32 %v1393, %v1402
    %v1404 = vmul.f32 %v1396, %v1402
    %v1405 = vmul.f32 %v1399, %v1402
    %v1406 = vmul.f32 %v1403, %v716
    %v1407 = vmul.f32 %v1403, %v721
    %v1408 = vmul.f32 %v1403, %v726
    %v1409 = vmul.f32 %v1403, %v731
    %v1410 = vmul.f32 %v1403, %v736
    %v1411 = vmul.f32 %v1403, %v741
    %v1412 = vmul.f32 %v1403, %v746
    %v1413 = vmul.f32 %v1403, %v751
    %v1414 = vmul.f32 %v1404, %v1027
    %v1415 = vmul.f32 %v1404, %v1032
    %v1416 = vmul.f32 %v1404, %v1037
    %v1417 = vmul.f32 %v1404, %v1042
    %v1418 = vmul.f32 %v1404, %v1047
    %v1419 = vmul.f32 %v1404, %v1052
    %v1420 = vmul.f32 %v1404, %v1057
    %v1421 = vmul.f32 %v1404, %v1062
    %v1422 = vadd.f32 %v1406, %v1414
    %v1423 = vadd.f32 %v1407, %v1415
    %v1424 = vadd.f32 %v1408, %v1416
    %v1425 = vadd.f32 %v1409, %v1417
    %v1426 = vadd.f32 %v1410, %v1418
    %v1427 = vadd.f32 %v1411, %v1419
    %v1428 = vadd.f32 %v1412, %v1420
    %v1429 = vadd.f32 %v1413, %v1421
    %v1430 = vmul.f32 %v1405, %v1338
    %v1431 = vmul.f32 %v1405, %v1343
    %v1432 = vmul.f32 %v1405, %v1348
    %v1433 = vmul.f32 %v1405, %v1353
    %v1434 = vmul.f32 %v1405, %v1358
    %v1435 = vmul.f32 %v1405, %v1363
    %v1436 = vmul.f32 %v1405, %v1368
    %v1437 = vmul.f32 %v1405, %v1373
    %v1438 = vadd.f32 %v1422, %v1430
    %v1439 = vadd.f32 %v1423, %v1431
    %v1440 = vadd.f32 %v1424, %v1432
    %v1441 = vadd.f32 %v1425, %v1433
    %v1442 = vadd.f32 %v1426, %v1434
    %v1443 = vadd.f32 %v1427, %v1435
    %v1444 = vadd.f32 %v1428, %v1436
    %v1445 = vadd.f32 %v1429, %v1437
    %1446 = vst [vmem:[#allocation2] sm:$0xff] %v1438
    %1447 = vst [vmem:[#allocation2 + $0x8] sm:$0xff] %v1439
    %1448 = vst [vmem:[#allocation2 + $0x10] sm:$0xff] %v1440
    %1449 = vst [vmem:[#allocation2 + $0x18] sm:$0xff] %v1441
    %1450 = vst [vmem:[#allocation2 + $0x20] sm:$0xff] %v1442
    %1451 = vst [vmem:[#allocation2 + $0x28] sm:$0xff] %v1443
    %1452 = vst [vmem:[#allocation2 + $0x30] sm:$0xff] %v1444
    %1453 = vst [vmem:[#allocation2 + $0x38] sm:$0xff] %v1445
    %1454 = vst [vmem:[#allocation4] sm:$0x1] %v1403
    %1455 = vst [vmem:[#allocation4 + $0x1] sm:$0x1] %v1404
    %1456 = vst [vmem:[#allocation4 + $0x2] sm:$0x1] %v1405
    // Predicated region
    $region50: #{tpu_custom_call.1} parent=1 // pred_check
      _
    $region51: #{tpu_custom_call.1} parent=1 // pred_check_branch
      %1458 = sbr.rel (0) target = $region53
    $region52: #{tpu_custom_call.1} parent=1 // pred_region
      %s1460 = ssub.s32 1024, 1024
      %1461 = vsyncadd [#allocation3], %s1460
      %s1462 = sshll.u32 [#allocation2], 4
      %s1463 = int_to_ptr.vmem [resolvable:$true] %s1462
      %1468 = dma.vmem_to_hbm [thread:$0]  %s1463, 1024, %s12, [#allocation3], 128, 128, 8
    $region53: #{tpu_custom_call.1} parent=1 // pred_fallthru
      _
    // Predicated region
    $region54: #{tpu_custom_call.1} parent=1 // pred_check
      _
    $region55: #{tpu_custom_call.1} parent=1 // pred_check_branch
      %1470 = sbr.rel (0) target = $region57
    $region56: #{tpu_custom_call.1} parent=1 // pred_region
      %s1472 = ssub.s32 64, 64
      %1473 = vsyncadd [#allocation5], %s1472
      %s1475 = sshll.u32 [#allocation4], 4
      %s1476 = int_to_ptr.vmem [resolvable:$true] %s1475
      %1478 = dma.vmem_to_hbm [thread:$0]  %s1476, 64, %s13, [#allocation5]
    $region57: #{tpu_custom_call.1} parent=1 // pred_fallthru
      _
    // Predicated region
    $region58: #{tpu_custom_call.1} parent=1 // pred_check
      _
    $region59: #{tpu_custom_call.1} parent=1 // pred_check_branch
      %1480 = sbr.rel (0) target = $region61
    $region60: #{tpu_custom_call.1} parent=1 // pred_region
      %1481 = dma.done [#allocation3], 1024
    $region61: #{tpu_custom_call.1} parent=1 // pred_fallthru
      _
    // Predicated region
    $region62: #{tpu_custom_call.1} parent=1 // pred_check
      _
    $region63: #{tpu_custom_call.1} parent=1 // pred_check_branch
      %1483 = sbr.rel (0) target = $region65
    $region64: #{tpu_custom_call.1} parent=1 // pred_region
      %1484 = dma.done [#allocation5], 64
    $region65: #{tpu_custom_call.1} parent=1 // pred_fallthru
      _
    %1485 = vsyncpa [#allocation3], 1
    %1486 = vsyncpa [#allocation5], 1

</llo_original>
